<compile_context>
chip_gen: v7x
topology: tpu7x:2x2x1
jax: 0.10.0
libtpu: 0.0.40
codegen_flags: <defaults>
</compile_context>

<pallas_src>
import functools
import math

import numpy as np
import jax
import jax.numpy as jnp
from jax import lax
from jax.experimental import pallas as pl
from jax.experimental.pallas import tpu as pltpu

CPAD = 128  # lane-dense width of the classifier output slab


# ----------------------------------------------------------------------------
# In-kernel helpers
# ----------------------------------------------------------------------------
def _layernorm(x, n):
    # Faithful to the source LayerNorm: mean / unbiased var over d_model, no
    # eps, no affine.  rsqrt runs on the EUP instead of a VPU divide.
    mu = jnp.mean(x, axis=-1, keepdims=True)
    var = jnp.sum((x - mu) ** 2, axis=-1, keepdims=True) * (1.0 / (n - 1))
    return (x - mu) * lax.rsqrt(var)


def fused_encoder_kernel(x0_ref, p_ref,
                         wv_ref, bv_ref, ww_ref, bw_ref,
                         w1_ref, b1_ref, w2_ref, b2_ref,
                         wc_ref, bc_ref,
                         probs_ref,
                         x_vmem, vmess_vmem,
                         *, n_heads, d_model, seq_len, batches_per_tile):
    layer = pl.program_id(1)
    d_head = d_model // n_heads
    L = seq_len

    @pl.when(layer == 0)
    def _init():
        x_vmem[...] = x0_ref[...]

    x = x_vmem[...]                     # (TR, D) f32, VMEM-resident across layers
    xb = x.astype(jnp.bfloat16)

    # ---- MultiHeadAttention, value path only --------------------------------
    vproj = jnp.dot(xb, wv_ref[0], preferred_element_type=jnp.float32) + bv_ref[0]
    vpb = vproj.astype(jnp.bfloat16)

    # Head permute v.view(B,L,H,dh).transpose(1,2).contiguous().view(B,L,D):
    # for destination row l' / destination head h'':  r = l'*H + h''
    #   source row        = r % L   -> per-batch (L,L) 0/1 permutation (MXU dot)
    #   source col group  = r // L  -> selected per row via an iota-derived mask,
    #                                  compressed to d_head lanes and stored into
    #                                  lane group h'' of the v_mess VMEM scratch.
    row_l = lax.broadcasted_iota(jnp.int32, (L, d_head), 0)   # row idx within a batch
    for b in range(batches_per_tile):          # static unroll over whole batches
        vp_b = vpb[b * L:(b + 1) * L, :]
        for h2 in range(n_heads):              # destination head (lane group)
            g = jnp.dot(p_ref[h2], vp_b, preferred_element_type=jnp.float32)  # (L, D)
            r_idx = row_l * n_heads + h2       # chunk index per destination row
            comp = jnp.zeros((L, d_head), jnp.float32)
            for h in range(n_heads):           # source column group
                keep = jnp.logical_and(r_idx >= h * L, r_idx < (h + 1) * L)
                comp = comp + g[:, h * d_head:(h + 1) * d_head] * keep.astype(jnp.float32)
            vmess_vmem[b * L:(b + 1) * L, h2 * d_head:(h2 + 1) * d_head] = comp

    # Single full-width contraction with the ORIGINAL w_w (no replication).
    attn_out = jnp.dot(vmess_vmem[...].astype(jnp.bfloat16), ww_ref[0],
                       preferred_element_type=jnp.float32) + bw_ref[0]

    y = _layernorm(x + attn_out, d_model)

    # ---- FeedForward (linear -> relu -> linear) + residual + LN --------------
    yb = y.astype(jnp.bfloat16)
    hid = jnp.maximum(
        jnp.dot(yb, w1_ref[0], preferred_element_type=jnp.float32) + b1_ref[0], 0.0)
    ffn = jnp.dot(hid.astype(jnp.bfloat16), w2_ref[0],
                  preferred_element_type=jnp.float32) + b2_ref[0]
    x_new = _layernorm(y + ffn, d_model)
    x_vmem[...] = x_new

    # ---- classifier fused into the last layer's grid step --------------------
    @pl.when(layer == pl.num_programs(1) - 1)
    def _classify():
        # Logits / bias / softmax strictly f32: the -1e30 pad-class bias is safe
        # in f32 but would become -inf (NaN risk) in bf16.
        logits = jnp.dot(x_new.astype(jnp.bfloat16), wc_ref[...],
                         preferred_element_type=jnp.float32) + bc_ref[...]
        mmax = jnp.max(logits, axis=-1, keepdims=True)
        e = jnp.exp(logits - mmax)
        # Exact divide so probs sum to 1 (runs once per tile; pl.reciprocal
        # (approx=True) would ride the EUP but deviate at ~1e-3).
        probs_ref[...] = e / jnp.sum(e, axis=-1, keepdims=True)


# ----------------------------------------------------------------------------
# Per-batch permutation constants (identical for every batch: A_h = I_B (x) P_h)
# ----------------------------------------------------------------------------
def _head_permute_matrices(L, H):
    """P[h'', l', l] = 1 iff l == (l'*H + h'') % L  (row-select part of the
    head permute within one batch)."""
    P = np.zeros((H, L, L), np.float32)
    for h2 in range(H):
        for lp in range(L):
            P[h2, lp, (lp * H + h2) % L] = 1.0
    return jnp.asarray(P)


# ----------------------------------------------------------------------------
# Parameters (deterministic, synthetic -- shapes follow the module __init__)
# ----------------------------------------------------------------------------
def _linear(key, fan_in, fan_out):
    kw, kb = jax.random.split(key)
    bound = 1.0 / math.sqrt(fan_in)
    w = jax.random.uniform(kw, (fan_in, fan_out), jnp.float32, -bound, bound)
    b = jax.random.uniform(kb, (1, fan_out), jnp.float32, -bound, bound)
    return w, b


def init_params(key, d_model, n_heads, ffn_hidden, max_len, n_classes):
    D, F = d_model, ffn_hidden
    keys = jax.random.split(key, 2 + n_classes)

    # TokenEmbedding: nn.Embedding(max_len, d_model, padding_idx=0)
    emb = jax.random.normal(keys[0], (max_len, D), jnp.float32)
    emb = emb.at[0].set(0.0)

    # PositionalEncoding (sinusoid table)
    pos = jnp.arange(max_len, dtype=jnp.float32)[:, None]
    two_i = jnp.arange(0, D, 2, dtype=jnp.float32)
    angle = pos / jnp.power(10000.0, two_i / D)
    enc = jnp.zeros((max_len, D), jnp.float32)
    enc = enc.at[:, 0::2].set(jnp.sin(angle))
    enc = enc.at[:, 1::2].set(jnp.cos(angle))

    # NB: the module builds `n_classes` encoder layers (n_layers is ignored).
    # w_q / w_k are not materialised: the attention result is discarded by the
    # module, so those weights never influence the output (dead parameters).
    layers = []
    for li in range(n_classes):
        lk = jax.random.split(keys[2 + li], 4)
        wv, bv = _linear(lk[0], D, D)
        ww, bw = _linear(lk[1], D, D)
        w1, b1 = _linear(lk[2], D, F)
        w2, b2 = _linear(lk[3], F, D)
        layers.append(dict(wv=wv, bv=bv, ww=ww, bw=bw, w1=w1, b1=b1, w2=w2, b2=b2))

    wc, bc = _linear(keys[1], D, n_classes)
    return dict(emb=emb, pos_enc=enc, layers=layers, wc=wc, bc=bc)


# ----------------------------------------------------------------------------
# VMEM budget: per-generation (v5e/v6e 128 MiB, v7x 64 MiB physical)
# ----------------------------------------------------------------------------
def _pick_vmem_limit():
    try:
        phys = pltpu.get_tpu_info().vmem_capacity_bytes
    except Exception:
        phys = 64 * 1024 * 1024            # conservative fallback (v7x-sized)
    return min(int(phys) * 3 // 4, 100 * 1024 * 1024)


# ----------------------------------------------------------------------------
# Forward pass (one pallas_call for all layers + classifier)
# ----------------------------------------------------------------------------
def bert_encoder_forward(params, ids, cfg, batches_per_tile=1):
    B, L = ids.shape
    D, H, C, F = cfg["d_model"], cfg["n_heads"], cfg["n_classes"], cfg["ffn_hidden"]
    N = len(params["layers"])              # == n_classes (module quirk)
    assert C <= CPAD and D % H == 0 and B % batches_per_tile == 0
    TR = batches_per_tile * L               # rows per tile (whole batches)
    R = B // batches_per_tile               # "parallel" row-tile grid extent
    BL = B * L

    # Embedding gather + positional encoding (pure data movement: XLA glue).
    x0 = (params["emb"][ids] + params["pos_enc"][:L, :][None]).reshape(BL, D)
    x0 = x0.astype(jnp.float32)

    # ---- stack per-layer weights once, outside the kernel --------------------
    def stack(name):
        return jnp.stack([lp[name] for lp in params["layers"]], axis=0)

    wv = stack("wv").astype(jnp.bfloat16)            # (N, D, D)
    bv = stack("bv")                                 # (N, 1, D) f32
    ww = stack("ww").astype(jnp.bfloat16)            # (N, D, D)  -- unreplicated
    bw = stack("bw")
    w1 = stack("w1").astype(jnp.bfloat16)            # (N, D, F)
    b1 = stack("b1")
    w2 = stack("w2").astype(jnp.bfloat16)            # (N, F, D)
    b2 = stack("b2")

    # Classifier padded to a lane-dense 128-wide slab; padded classes get bias
    # -1e30 (f32) -> exp underflows to 0, softmax over the first C cols unchanged.
    wc = jnp.zeros((D, CPAD), jnp.float32).at[:, :C].set(params["wc"]).astype(jnp.bfloat16)
    bc = jnp.full((1, CPAD), -1e30, jnp.float32).at[:, :C].set(params["bc"])

    P = _head_permute_matrices(L, H).astype(jnp.bfloat16)   # (H, L, L)

    row2 = lambda r, l: (r, 0)
    const2 = lambda r, l: (0, 0)
    const3 = lambda r, l: (0, 0, 0)
    layer3 = lambda r, l: (l, 0, 0)

    kernel = functools.partial(fused_encoder_kernel, n_heads=H, d_model=D,
                               seq_len=L, batches_per_tile=batches_per_tile)

    probs_pad = pl.pallas_call(
        kernel,
        grid=(R, N),                                 # (row tiles, layers)
        in_specs=[
            pl.BlockSpec((TR, D), row2),             # x0 (row tile)
            pl.BlockSpec((H, L, L), const3),         # per-batch row permute
            pl.BlockSpec((1, D, D), layer3),         # Wv
            pl.BlockSpec((1, 1, D), layer3),         # bv
            pl.BlockSpec((1, D, D), layer3),         # w_w (original)
            pl.BlockSpec((1, 1, D), layer3),         # bw
            pl.BlockSpec((1, D, F), layer3),         # W1
            pl.BlockSpec((1, 1, F), layer3),         # b1
            pl.BlockSpec((1, F, D), layer3),         # W2
            pl.BlockSpec((1, 1, D), layer3),         # b2
            pl.BlockSpec((D, CPAD), const2),         # Wc (padded)
            pl.BlockSpec((1, CPAD), const2),         # bc (padded)
        ],
        out_specs=pl.BlockSpec((TR, CPAD), row2),    # lane-dense probs slab
        out_shape=jax.ShapeDtypeStruct((BL, CPAD), jnp.float32),
        scratch_shapes=[pltpu.VMEM((TR, D), jnp.float32),   # x carry across layers
                        pltpu.VMEM((TR, D), jnp.float32)],  # v_mess
        compiler_params=pltpu.CompilerParams(
            dimension_semantics=("parallel", "arbitrary"),
            vmem_limit_bytes=_pick_vmem_limit()),
    )(x0, P, wv, bv, ww, bw, w1, b1, w2, b2, wc, bc)

    probs = probs_pad[:, :C]
    out = probs.reshape(B, L, C)
    # argmax in the wrapper: avoids a lane-sparse (BL, 1) int output from the
    # kernel.  (torch.argmax would give int64; JAX default is int32.)
    cls = jnp.argmax(probs, axis=-1).astype(jnp.int32).reshape(B, L)
    return cls, out


# ----------------------------------------------------------------------------
# Plain-JAX reference (same dtype policy) for validation
# ----------------------------------------------------------------------------
def reference_forward(params, ids, cfg):
    B, L = ids.shape
    D, H, C = cfg["d_model"], cfg["n_heads"], cfg["n_classes"]
    dh = D // H

    def ln(t):
        mu = jnp.mean(t, axis=-1, keepdims=True)
        var = jnp.sum((t - mu) ** 2, axis=-1, keepdims=True) / (D - 1)
        return (t - mu) / jnp.sqrt(var)

    def mm(a, w):
        return jnp.dot(a.astype(jnp.bfloat16), w.astype(jnp.bfloat16),
                       preferred_element_type=jnp.float32)

    x = (params["emb"][ids] + params["pos_enc"][:L, :][None]).astype(jnp.float32)
    for lp in params["layers"]:
        v = mm(x, lp["wv"]) + lp["bv"]
        vm = v.reshape(B, L, H, dh).transpose(0, 2, 1, 3).reshape(B, L, D)
        y = ln(x + mm(vm, lp["ww"]) + lp["bw"])
        hdn = jnp.maximum(mm(y, lp["w1"]) + lp["b1"], 0.0)
        x = ln(y + mm(hdn, lp["w2"]) + lp["b2"])
    logits = mm(x, params["wc"]) + params["bc"]
    e = jnp.exp(logits - jnp.max(logits, axis=-1, keepdims=True))
    probs = e / jnp.sum(e, axis=-1, keepdims=True)
    return jnp.argmax(probs, axis=-1).astype(jnp.int32), probs


# ----------------------------------------------------------------------------
if __name__ == "__main__":
    B, L = 2, 8
    cfg = dict(d_model=32, n_heads=4, ffn_hidden=64,
               n_layers=2,   # ignored by the module (layer count = n_classes)
               max_len=16, n_classes=3)

    key = jax.random.PRNGKey(0)
    kp, kx = jax.random.split(key)
    params = init_params(kp, cfg["d_model"], cfg["n_heads"], cfg["ffn_hidden"],
                         cfg["max_len"], cfg["n_classes"])
    ids = jax.random.randint(kx, (B, L), 0, cfg["max_len"], dtype=jnp.int32)

    # One whole batch per row tile -> 2-wide "parallel" axis (demo of the
    # megacore split); at production pick enough batches per tile for ~512 rows.
    fwd = jax.jit(lambda p, i: bert_encoder_forward(p, i, cfg, batches_per_tile=1))
    cls, out = fwd(params, ids)
    jax.block_until_ready((cls, out))

    assert cls.shape == (B, L)
    assert out.shape == (B, L, cfg["n_classes"])
    assert bool(jnp.all(jnp.isfinite(out)))

    ref_cls, ref_out = jax.jit(lambda p, i: reference_forward(p, i, cfg))(params, ids)
    assert bool(jnp.allclose(out, ref_out, rtol=1e-2, atol=1e-2))

    print("KERNEL_OK")
</pallas_src>

<mosaic_0001>
module attributes {stable_mosaic.version = 11 : i64} {
  func.func @fused_encoder_kernel(%arg0: i32, %arg1: i32, %arg2: memref<8x32xf32, #tpu.memory_space<vmem>>, %arg3: memref<4x8x8xbf16, #tpu.memory_space<vmem>>, %arg4: memref<1x32x32xbf16, #tpu.memory_space<vmem>>, %arg5: memref<1x1x32xf32, #tpu.memory_space<vmem>>, %arg6: memref<1x32x32xbf16, #tpu.memory_space<vmem>>, %arg7: memref<1x1x32xf32, #tpu.memory_space<vmem>>, %arg8: memref<1x32x64xbf16, #tpu.memory_space<vmem>>, %arg9: memref<1x1x64xf32, #tpu.memory_space<vmem>>, %arg10: memref<1x64x32xbf16, #tpu.memory_space<vmem>>, %arg11: memref<1x1x32xf32, #tpu.memory_space<vmem>>, %arg12: memref<32x128xbf16, #tpu.memory_space<vmem>>, %arg13: memref<1x128xf32, #tpu.memory_space<vmem>>, %arg14: memref<8x128xf32, #tpu.memory_space<vmem>>, %arg15: memref<8x32xf32, #tpu.memory_space<vmem>>, %arg16: memref<8x32xf32, #tpu.memory_space<vmem>>) attributes {dimension_semantics = [#tpu.dimension_semantics<parallel>, #tpu.dimension_semantics<arbitrary>], iteration_bounds = array<i64: 2, 3>, scalar_prefetch = 0 : i64, scratch_operands = 2 : i64, tpu.core_type = #tpu.core_type<tc>, window_params = [{transform_indices = @transform_0, window_bounds = array<i64: 8, 32>}, {pipeline_mode = #tpu.pipeline_mode<synchronous>, transform_indices = @transform_1, window_bounds = array<i64: 4, 8, 8>}, {transform_indices = @transform_2, window_bounds = array<i64: 1, 32, 32>}, {transform_indices = @transform_3, window_bounds = array<i64: 1, 1, 32>}, {transform_indices = @transform_4, window_bounds = array<i64: 1, 32, 32>}, {transform_indices = @transform_5, window_bounds = array<i64: 1, 1, 32>}, {transform_indices = @transform_6, window_bounds = array<i64: 1, 32, 64>}, {transform_indices = @transform_7, window_bounds = array<i64: 1, 1, 64>}, {transform_indices = @transform_8, window_bounds = array<i64: 1, 64, 32>}, {transform_indices = @transform_9, window_bounds = array<i64: 1, 1, 32>}, {pipeline_mode = #tpu.pipeline_mode<synchronous>, transform_indices = @transform_10, window_bounds = array<i64: 32, 128>}, {pipeline_mode = #tpu.pipeline_mode<synchronous>, transform_indices = @transform_11, window_bounds = array<i64: 1, 128>}, {transform_indices = @transform_12, window_bounds = array<i64: 8, 128>}]} {
    %c0_i32 = arith.constant 0 : i32
    %0 = arith.cmpi eq, %arg1, %c0_i32 : i32
    %1 = arith.extui %0 : i1 to i32
    %c0_i32_0 = arith.constant 0 : i32
    %2 = arith.cmpi ne, %1, %c0_i32_0 : i32
    scf.if %2 {
      %c0_98 = arith.constant 0 : index
      %c0_99 = arith.constant 0 : index
      %275 = vector.load %arg2[%c0_98, %c0_99] : memref<8x32xf32, #tpu.memory_space<vmem>>, vector<8x32xf32>
      %c0_100 = arith.constant 0 : index
      %c0_101 = arith.constant 0 : index
      %276 = vector.load %arg15[%c0_100, %c0_101] : memref<8x32xf32, #tpu.memory_space<vmem>>, vector<8x32xf32>
      tpu.vector_store %arg15[%c0_100, %c0_101], %275 {strides = array<i32>} : memref<8x32xf32, #tpu.memory_space<vmem>>, vector<8x32xf32>,
    } else {
    }
    %c0 = arith.constant 0 : index
    %c0_1 = arith.constant 0 : index
    %3 = vector.load %arg15[%c0, %c0_1] : memref<8x32xf32, #tpu.memory_space<vmem>>, vector<8x32xf32>
    %4 = arith.truncf %3 : vector<8x32xf32> to vector<8x32xbf16>
    %c0_2 = arith.constant 0 : index
    %c0_3 = arith.constant 0 : index
    %c0_4 = arith.constant 0 : index
    %5 = vector.load %arg4[%c0_2, %c0_3, %c0_4] : memref<1x32x32xbf16, #tpu.memory_space<vmem>>, vector<1x32x32xbf16>
    %6 = vector.shape_cast %5 : vector<1x32x32xbf16> to vector<32x32xbf16>
    %cst = arith.constant dense<0.000000e+00> : vector<8x32xf32>
    %7 = tpu.matmul %4, %6, %cst {dimension_numbers = #tpu.dot_dimension_numbers<[1], [0], [0], [1], [0, 0, 1, 1], [], []>} : vector<8x32xbf16>, vector<32x32xbf16>, vector<8x32xf32> -> vector<8x32xf32>
    %c0_5 = arith.constant 0 : index
    %c0_6 = arith.constant 0 : index
    %c0_7 = arith.constant 0 : index
    %8 = vector.load %arg5[%c0_5, %c0_6, %c0_7] : memref<1x1x32xf32, #tpu.memory_space<vmem>>, vector<1x1x32xf32>
    %9 = vector.shape_cast %8 : vector<1x1x32xf32> to vector<1x32xf32>
    %10 = vector.broadcast %9 : vector<1x32xf32> to vector<8x32xf32>
    %11 = arith.addf %7, %10 : vector<8x32xf32>
    %12 = arith.truncf %11 : vector<8x32xf32> to vector<8x32xbf16>
    %13 = tpu.iota {dimensions = array<i32: 0>} : vector<8x8xi32>
    %c0_8 = arith.constant 0 : index
    %c0_9 = arith.constant 0 : index
    %c0_10 = arith.constant 0 : index
    %14 = vector.load %arg3[%c0_8, %c0_9, %c0_10] : memref<4x8x8xbf16, #tpu.memory_space<vmem>>, vector<1x8x8xbf16>
    %15 = vector.shape_cast %14 : vector<1x8x8xbf16> to vector<8x8xbf16>
    %cst_11 = arith.constant dense<0.000000e+00> : vector<8x32xf32>
    %16 = tpu.matmul %15, %12, %cst_11 {dimension_numbers = #tpu.dot_dimension_numbers<[1], [0], [0], [1], [0, 0, 1, 1], [], []>} : vector<8x8xbf16>, vector<8x32xbf16>, vector<8x32xf32> -> vector<8x32xf32>
    %c4_i32 = arith.constant 4 : i32
    %17 = vector.broadcast %c4_i32 : i32 to vector<8x8xi32>
    %18 = arith.muli %13, %17 : vector<8x8xi32>
    %c0_i32_12 = arith.constant 0 : i32
    %19 = vector.broadcast %c0_i32_12 : i32 to vector<8x8xi32>
    %20 = arith.addi %18, %19 : vector<8x8xi32>
    %cst_13 = arith.constant 0.000000e+00 : f32
    %21 = vector.broadcast %cst_13 : f32 to vector<8x8xf32>
    %c0_i32_14 = arith.constant 0 : i32
    %22 = vector.broadcast %c0_i32_14 : i32 to vector<8x8xi32>
    %23 = arith.cmpi sge, %20, %22 : vector<8x8xi32>
    %c8_i32 = arith.constant 8 : i32
    %24 = vector.broadcast %c8_i32 : i32 to vector<8x8xi32>
    %25 = arith.cmpi slt, %20, %24 : vector<8x8xi32>
    %26 = arith.andi %23, %25 : vector<8x8xi1>
    %27 = vector.extract_strided_slice %16 {offsets = [0, 0], sizes = [8, 8], strides = [1, 1]} : vector<8x32xf32> to vector<8x8xf32>
    %28 = arith.extui %26 : vector<8x8xi1> to vector<8x8xi32>
    %29 = arith.sitofp %28 : vector<8x8xi32> to vector<8x8xf32>
    %30 = arith.mulf %27, %29 : vector<8x8xf32>
    %31 = arith.addf %21, %30 : vector<8x8xf32>
    %c8_i32_15 = arith.constant 8 : i32
    %32 = vector.broadcast %c8_i32_15 : i32 to vector<8x8xi32>
    %33 = arith.cmpi sge, %20, %32 : vector<8x8xi32>
    %c16_i32 = arith.constant 16 : i32
    %34 = vector.broadcast %c16_i32 : i32 to vector<8x8xi32>
    %35 = arith.cmpi slt, %20, %34 : vector<8x8xi32>
    %36 = arith.andi %33, %35 : vector<8x8xi1>
    %37 = vector.extract_strided_slice %16 {offsets = [0, 8], sizes = [8, 8], strides = [1, 1]} : vector<8x32xf32> to vector<8x8xf32>
    %38 = arith.extui %36 : vector<8x8xi1> to vector<8x8xi32>
    %39 = arith.sitofp %38 : vector<8x8xi32> to vector<8x8xf32>
    %40 = arith.mulf %37, %39 : vector<8x8xf32>
    %41 = arith.addf %31, %40 : vector<8x8xf32>
    %c16_i32_16 = arith.constant 16 : i32
    %42 = vector.broadcast %c16_i32_16 : i32 to vector<8x8xi32>
    %43 = arith.cmpi sge, %20, %42 : vector<8x8xi32>
    %c24_i32 = arith.constant 24 : i32
    %44 = vector.broadcast %c24_i32 : i32 to vector<8x8xi32>
    %45 = arith.cmpi slt, %20, %44 : vector<8x8xi32>
    %46 = arith.andi %43, %45 : vector<8x8xi1>
    %47 = vector.extract_strided_slice %16 {offsets = [0, 16], sizes = [8, 8], strides = [1, 1]} : vector<8x32xf32> to vector<8x8xf32>
    %48 = arith.extui %46 : vector<8x8xi1> to vector<8x8xi32>
    %49 = arith.sitofp %48 : vector<8x8xi32> to vector<8x8xf32>
    %50 = arith.mulf %47, %49 : vector<8x8xf32>
    %51 = arith.addf %41, %50 : vector<8x8xf32>
    %c24_i32_17 = arith.constant 24 : i32
    %52 = vector.broadcast %c24_i32_17 : i32 to vector<8x8xi32>
    %53 = arith.cmpi sge, %20, %52 : vector<8x8xi32>
    %c32_i32 = arith.constant 32 : i32
    %54 = vector.broadcast %c32_i32 : i32 to vector<8x8xi32>
    %55 = arith.cmpi slt, %20, %54 : vector<8x8xi32>
    %56 = arith.andi %53, %55 : vector<8x8xi1>
    %57 = vector.extract_strided_slice %16 {offsets = [0, 24], sizes = [8, 8], strides = [1, 1]} : vector<8x32xf32> to vector<8x8xf32>
    %58 = arith.extui %56 : vector<8x8xi1> to vector<8x8xi32>
    %59 = arith.sitofp %58 : vector<8x8xi32> to vector<8x8xf32>
    %60 = arith.mulf %57, %59 : vector<8x8xf32>
    %61 = arith.addf %51, %60 : vector<8x8xf32>
    %c0_18 = arith.constant 0 : index
    %c0_19 = arith.constant 0 : index
    %62 = vector.load %arg16[%c0_18, %c0_19] : memref<8x32xf32, #tpu.memory_space<vmem>>, vector<8x8xf32>
    tpu.vector_store %arg16[%c0_18, %c0_19], %61 {strides = array<i32>} : memref<8x32xf32, #tpu.memory_space<vmem>>, vector<8x8xf32>,
    %c1 = arith.constant 1 : index
    %c0_20 = arith.constant 0 : index
    %c0_21 = arith.constant 0 : index
    %63 = vector.load %arg3[%c1, %c0_20, %c0_21] : memref<4x8x8xbf16, #tpu.memory_space<vmem>>, vector<1x8x8xbf16>
    %64 = vector.shape_cast %63 : vector<1x8x8xbf16> to vector<8x8xbf16>
    %cst_22 = arith.constant dense<0.000000e+00> : vector<8x32xf32>
    %65 = tpu.matmul %64, %12, %cst_22 {dimension_numbers = #tpu.dot_dimension_numbers<[1], [0], [0], [1], [0, 0, 1, 1], [], []>} : vector<8x8xbf16>, vector<8x32xbf16>, vector<8x32xf32> -> vector<8x32xf32>
    %c4_i32_23 = arith.constant 4 : i32
    %66 = vector.broadcast %c4_i32_23 : i32 to vector<8x8xi32>
    %67 = arith.muli %13, %66 : vector<8x8xi32>
    %c1_i32 = arith.constant 1 : i32
    %68 = vector.broadcast %c1_i32 : i32 to vector<8x8xi32>
    %69 = arith.addi %67, %68 : vector<8x8xi32>
    %cst_24 = arith.constant 0.000000e+00 : f32
    %70 = vector.broadcast %cst_24 : f32 to vector<8x8xf32>
    %c0_i32_25 = arith.constant 0 : i32
    %71 = vector.broadcast %c0_i32_25 : i32 to vector<8x8xi32>
    %72 = arith.cmpi sge, %69, %71 : vector<8x8xi32>
    %c8_i32_26 = arith.constant 8 : i32
    %73 = vector.broadcast %c8_i32_26 : i32 to vector<8x8xi32>
    %74 = arith.cmpi slt, %69, %73 : vector<8x8xi32>
    %75 = arith.andi %72, %74 : vector<8x8xi1>
    %76 = vector.extract_strided_slice %65 {offsets = [0, 0], sizes = [8, 8], strides = [1, 1]} : vector<8x32xf32> to vector<8x8xf32>
    %77 = arith.extui %75 : vector<8x8xi1> to vector<8x8xi32>
    %78 = arith.sitofp %77 : vector<8x8xi32> to vector<8x8xf32>
    %79 = arith.mulf %76, %78 : vector<8x8xf32>
    %80 = arith.addf %70, %79 : vector<8x8xf32>
    %c8_i32_27 = arith.constant 8 : i32
    %81 = vector.broadcast %c8_i32_27 : i32 to vector<8x8xi32>
    %82 = arith.cmpi sge, %69, %81 : vector<8x8xi32>
    %c16_i32_28 = arith.constant 16 : i32
    %83 = vector.broadcast %c16_i32_28 : i32 to vector<8x8xi32>
    %84 = arith.cmpi slt, %69, %83 : vector<8x8xi32>
    %85 = arith.andi %82, %84 : vector<8x8xi1>
    %86 = vector.extract_strided_slice %65 {offsets = [0, 8], sizes = [8, 8], strides = [1, 1]} : vector<8x32xf32> to vector<8x8xf32>
    %87 = arith.extui %85 : vector<8x8xi1> to vector<8x8xi32>
    %88 = arith.sitofp %87 : vector<8x8xi32> to vector<8x8xf32>
    %89 = arith.mulf %86, %88 : vector<8x8xf32>
    %90 = arith.addf %80, %89 : vector<8x8xf32>
    %c16_i32_29 = arith.constant 16 : i32
    %91 = vector.broadcast %c16_i32_29 : i32 to vector<8x8xi32>
    %92 = arith.cmpi sge, %69, %91 : vector<8x8xi32>
    %c24_i32_30 = arith.constant 24 : i32
    %93 = vector.broadcast %c24_i32_30 : i32 to vector<8x8xi32>
    %94 = arith.cmpi slt, %69, %93 : vector<8x8xi32>
    %95 = arith.andi %92, %94 : vector<8x8xi1>
    %96 = vector.extract_strided_slice %65 {offsets = [0, 16], sizes = [8, 8], strides = [1, 1]} : vector<8x32xf32> to vector<8x8xf32>
    %97 = arith.extui %95 : vector<8x8xi1> to vector<8x8xi32>
    %98 = arith.sitofp %97 : vector<8x8xi32> to vector<8x8xf32>
    %99 = arith.mulf %96, %98 : vector<8x8xf32>
    %100 = arith.addf %90, %99 : vector<8x8xf32>
    %c24_i32_31 = arith.constant 24 : i32
    %101 = vector.broadcast %c24_i32_31 : i32 to vector<8x8xi32>
    %102 = arith.cmpi sge, %69, %101 : vector<8x8xi32>
    %c32_i32_32 = arith.constant 32 : i32
    %103 = vector.broadcast %c32_i32_32 : i32 to vector<8x8xi32>
    %104 = arith.cmpi slt, %69, %103 : vector<8x8xi32>
    %105 = arith.andi %102, %104 : vector<8x8xi1>
    %106 = vector.extract_strided_slice %65 {offsets = [0, 24], sizes = [8, 8], strides = [1, 1]} : vector<8x32xf32> to vector<8x8xf32>
    %107 = arith.extui %105 : vector<8x8xi1> to vector<8x8xi32>
    %108 = arith.sitofp %107 : vector<8x8xi32> to vector<8x8xf32>
    %109 = arith.mulf %106, %108 : vector<8x8xf32>
    %110 = arith.addf %100, %109 : vector<8x8xf32>
    %c0_33 = arith.constant 0 : index
    %c8 = arith.constant 8 : index
    %111 = vector.load %arg16[%c0_33, %c8] : memref<8x32xf32, #tpu.memory_space<vmem>>, vector<8x8xf32>
    tpu.vector_store %arg16[%c0_33, %c8], %110 {strides = array<i32>} : memref<8x32xf32, #tpu.memory_space<vmem>>, vector<8x8xf32>,
    %c2 = arith.constant 2 : index
    %c0_34 = arith.constant 0 : index
    %c0_35 = arith.constant 0 : index
    %112 = vector.load %arg3[%c2, %c0_34, %c0_35] : memref<4x8x8xbf16, #tpu.memory_space<vmem>>, vector<1x8x8xbf16>
    %113 = vector.shape_cast %112 : vector<1x8x8xbf16> to vector<8x8xbf16>
    %cst_36 = arith.constant dense<0.000000e+00> : vector<8x32xf32>
    %114 = tpu.matmul %113, %12, %cst_36 {dimension_numbers = #tpu.dot_dimension_numbers<[1], [0], [0], [1], [0, 0, 1, 1], [], []>} : vector<8x8xbf16>, vector<8x32xbf16>, vector<8x32xf32> -> vector<8x32xf32>
    %c4_i32_37 = arith.constant 4 : i32
    %115 = vector.broadcast %c4_i32_37 : i32 to vector<8x8xi32>
    %116 = arith.muli %13, %115 : vector<8x8xi32>
    %c2_i32 = arith.constant 2 : i32
    %117 = vector.broadcast %c2_i32 : i32 to vector<8x8xi32>
    %118 = arith.addi %116, %117 : vector<8x8xi32>
    %cst_38 = arith.constant 0.000000e+00 : f32
    %119 = vector.broadcast %cst_38 : f32 to vector<8x8xf32>
    %c0_i32_39 = arith.constant 0 : i32
    %120 = vector.broadcast %c0_i32_39 : i32 to vector<8x8xi32>
    %121 = arith.cmpi sge, %118, %120 : vector<8x8xi32>
    %c8_i32_40 = arith.constant 8 : i32
    %122 = vector.broadcast %c8_i32_40 : i32 to vector<8x8xi32>
    %123 = arith.cmpi slt, %118, %122 : vector<8x8xi32>
    %124 = arith.andi %121, %123 : vector<8x8xi1>
    %125 = vector.extract_strided_slice %114 {offsets = [0, 0], sizes = [8, 8], strides = [1, 1]} : vector<8x32xf32> to vector<8x8xf32>
    %126 = arith.extui %124 : vector<8x8xi1> to vector<8x8xi32>
    %127 = arith.sitofp %126 : vector<8x8xi32> to vector<8x8xf32>
    %128 = arith.mulf %125, %127 : vector<8x8xf32>
    %129 = arith.addf %119, %128 : vector<8x8xf32>
    %c8_i32_41 = arith.constant 8 : i32
    %130 = vector.broadcast %c8_i32_41 : i32 to vector<8x8xi32>
    %131 = arith.cmpi sge, %118, %130 : vector<8x8xi32>
    %c16_i32_42 = arith.constant 16 : i32
    %132 = vector.broadcast %c16_i32_42 : i32 to vector<8x8xi32>
    %133 = arith.cmpi slt, %118, %132 : vector<8x8xi32>
    %134 = arith.andi %131, %133 : vector<8x8xi1>
    %135 = vector.extract_strided_slice %114 {offsets = [0, 8], sizes = [8, 8], strides = [1, 1]} : vector<8x32xf32> to vector<8x8xf32>
    %136 = arith.extui %134 : vector<8x8xi1> to vector<8x8xi32>
    %137 = arith.sitofp %136 : vector<8x8xi32> to vector<8x8xf32>
    %138 = arith.mulf %135, %137 : vector<8x8xf32>
    %139 = arith.addf %129, %138 : vector<8x8xf32>
    %c16_i32_43 = arith.constant 16 : i32
    %140 = vector.broadcast %c16_i32_43 : i32 to vector<8x8xi32>
    %141 = arith.cmpi sge, %118, %140 : vector<8x8xi32>
    %c24_i32_44 = arith.constant 24 : i32
    %142 = vector.broadcast %c24_i32_44 : i32 to vector<8x8xi32>
    %143 = arith.cmpi slt, %118, %142 : vector<8x8xi32>
    %144 = arith.andi %141, %143 : vector<8x8xi1>
    %145 = vector.extract_strided_slice %114 {offsets = [0, 16], sizes = [8, 8], strides = [1, 1]} : vector<8x32xf32> to vector<8x8xf32>
    %146 = arith.extui %144 : vector<8x8xi1> to vector<8x8xi32>
    %147 = arith.sitofp %146 : vector<8x8xi32> to vector<8x8xf32>
    %148 = arith.mulf %145, %147 : vector<8x8xf32>
    %149 = arith.addf %139, %148 : vector<8x8xf32>
    %c24_i32_45 = arith.constant 24 : i32
    %150 = vector.broadcast %c24_i32_45 : i32 to vector<8x8xi32>
    %151 = arith.cmpi sge, %118, %150 : vector<8x8xi32>
    %c32_i32_46 = arith.constant 32 : i32
    %152 = vector.broadcast %c32_i32_46 : i32 to vector<8x8xi32>
    %153 = arith.cmpi slt, %118, %152 : vector<8x8xi32>
    %154 = arith.andi %151, %153 : vector<8x8xi1>
    %155 = vector.extract_strided_slice %114 {offsets = [0, 24], sizes = [8, 8], strides = [1, 1]} : vector<8x32xf32> to vector<8x8xf32>
    %156 = arith.extui %154 : vector<8x8xi1> to vector<8x8xi32>
    %157 = arith.sitofp %156 : vector<8x8xi32> to vector<8x8xf32>
    %158 = arith.mulf %155, %157 : vector<8x8xf32>
    %159 = arith.addf %149, %158 : vector<8x8xf32>
    %c0_47 = arith.constant 0 : index
    %c16 = arith.constant 16 : index
    %160 = vector.load %arg16[%c0_47, %c16] : memref<8x32xf32, #tpu.memory_space<vmem>>, vector<8x8xf32>
    tpu.vector_store %arg16[%c0_47, %c16], %159 {strides = array<i32>} : memref<8x32xf32, #tpu.memory_space<vmem>>, vector<8x8xf32>,
    %c3 = arith.constant 3 : index
    %c0_48 = arith.constant 0 : index
    %c0_49 = arith.constant 0 : index
    %161 = vector.load %arg3[%c3, %c0_48, %c0_49] : memref<4x8x8xbf16, #tpu.memory_space<vmem>>, vector<1x8x8xbf16>
    %162 = vector.shape_cast %161 : vector<1x8x8xbf16> to vector<8x8xbf16>
    %cst_50 = arith.constant dense<0.000000e+00> : vector<8x32xf32>
    %163 = tpu.matmul %162, %12, %cst_50 {dimension_numbers = #tpu.dot_dimension_numbers<[1], [0], [0], [1], [0, 0, 1, 1], [], []>} : vector<8x8xbf16>, vector<8x32xbf16>, vector<8x32xf32> -> vector<8x32xf32>
    %c4_i32_51 = arith.constant 4 : i32
    %164 = vector.broadcast %c4_i32_51 : i32 to vector<8x8xi32>
    %165 = arith.muli %13, %164 : vector<8x8xi32>
    %c3_i32 = arith.constant 3 : i32
    %166 = vector.broadcast %c3_i32 : i32 to vector<8x8xi32>
    %167 = arith.addi %165, %166 : vector<8x8xi32>
    %cst_52 = arith.constant 0.000000e+00 : f32
    %168 = vector.broadcast %cst_52 : f32 to vector<8x8xf32>
    %c0_i32_53 = arith.constant 0 : i32
    %169 = vector.broadcast %c0_i32_53 : i32 to vector<8x8xi32>
    %170 = arith.cmpi sge, %167, %169 : vector<8x8xi32>
    %c8_i32_54 = arith.constant 8 : i32
    %171 = vector.broadcast %c8_i32_54 : i32 to vector<8x8xi32>
    %172 = arith.cmpi slt, %167, %171 : vector<8x8xi32>
    %173 = arith.andi %170, %172 : vector<8x8xi1>
    %174 = vector.extract_strided_slice %163 {offsets = [0, 0], sizes = [8, 8], strides = [1, 1]} : vector<8x32xf32> to vector<8x8xf32>
    %175 = arith.extui %173 : vector<8x8xi1> to vector<8x8xi32>
    %176 = arith.sitofp %175 : vector<8x8xi32> to vector<8x8xf32>
    %177 = arith.mulf %174, %176 : vector<8x8xf32>
    %178 = arith.addf %168, %177 : vector<8x8xf32>
    %c8_i32_55 = arith.constant 8 : i32
    %179 = vector.broadcast %c8_i32_55 : i32 to vector<8x8xi32>
    %180 = arith.cmpi sge, %167, %179 : vector<8x8xi32>
    %c16_i32_56 = arith.constant 16 : i32
    %181 = vector.broadcast %c16_i32_56 : i32 to vector<8x8xi32>
    %182 = arith.cmpi slt, %167, %181 : vector<8x8xi32>
    %183 = arith.andi %180, %182 : vector<8x8xi1>
    %184 = vector.extract_strided_slice %163 {offsets = [0, 8], sizes = [8, 8], strides = [1, 1]} : vector<8x32xf32> to vector<8x8xf32>
    %185 = arith.extui %183 : vector<8x8xi1> to vector<8x8xi32>
    %186 = arith.sitofp %185 : vector<8x8xi32> to vector<8x8xf32>
    %187 = arith.mulf %184, %186 : vector<8x8xf32>
    %188 = arith.addf %178, %187 : vector<8x8xf32>
    %c16_i32_57 = arith.constant 16 : i32
    %189 = vector.broadcast %c16_i32_57 : i32 to vector<8x8xi32>
    %190 = arith.cmpi sge, %167, %189 : vector<8x8xi32>
    %c24_i32_58 = arith.constant 24 : i32
    %191 = vector.broadcast %c24_i32_58 : i32 to vector<8x8xi32>
    %192 = arith.cmpi slt, %167, %191 : vector<8x8xi32>
    %193 = arith.andi %190, %192 : vector<8x8xi1>
    %194 = vector.extract_strided_slice %163 {offsets = [0, 16], sizes = [8, 8], strides = [1, 1]} : vector<8x32xf32> to vector<8x8xf32>
    %195 = arith.extui %193 : vector<8x8xi1> to vector<8x8xi32>
    %196 = arith.sitofp %195 : vector<8x8xi32> to vector<8x8xf32>
    %197 = arith.mulf %194, %196 : vector<8x8xf32>
    %198 = arith.addf %188, %197 : vector<8x8xf32>
    %c24_i32_59 = arith.constant 24 : i32
    %199 = vector.broadcast %c24_i32_59 : i32 to vector<8x8xi32>
    %200 = arith.cmpi sge, %167, %199 : vector<8x8xi32>
    %c32_i32_60 = arith.constant 32 : i32
    %201 = vector.broadcast %c32_i32_60 : i32 to vector<8x8xi32>
    %202 = arith.cmpi slt, %167, %201 : vector<8x8xi32>
    %203 = arith.andi %200, %202 : vector<8x8xi1>
    %204 = vector.extract_strided_slice %163 {offsets = [0, 24], sizes = [8, 8], strides = [1, 1]} : vector<8x32xf32> to vector<8x8xf32>
    %205 = arith.extui %203 : vector<8x8xi1> to vector<8x8xi32>
    %206 = arith.sitofp %205 : vector<8x8xi32> to vector<8x8xf32>
    %207 = arith.mulf %204, %206 : vector<8x8xf32>
    %208 = arith.addf %198, %207 : vector<8x8xf32>
    %c0_61 = arith.constant 0 : index
    %c24 = arith.constant 24 : index
    %209 = vector.load %arg16[%c0_61, %c24] : memref<8x32xf32, #tpu.memory_space<vmem>>, vector<8x8xf32>
    tpu.vector_store %arg16[%c0_61, %c24], %208 {strides = array<i32>} : memref<8x32xf32, #tpu.memory_space<vmem>>, vector<8x8xf32>,
    %c0_62 = arith.constant 0 : index
    %c0_63 = arith.constant 0 : index
    %210 = vector.load %arg16[%c0_62, %c0_63] : memref<8x32xf32, #tpu.memory_space<vmem>>, vector<8x32xf32>
    %211 = arith.truncf %210 : vector<8x32xf32> to vector<8x32xbf16>
    %c0_64 = arith.constant 0 : index
    %c0_65 = arith.constant 0 : index
    %c0_66 = arith.constant 0 : index
    %212 = vector.load %arg6[%c0_64, %c0_65, %c0_66] : memref<1x32x32xbf16, #tpu.memory_space<vmem>>, vector<1x32x32xbf16>
    %213 = vector.shape_cast %212 : vector<1x32x32xbf16> to vector<32x32xbf16>
    %cst_67 = arith.constant dense<0.000000e+00> : vector<8x32xf32>
    %214 = tpu.matmul %211, %213, %cst_67 {dimension_numbers = #tpu.dot_dimension_numbers<[1], [0], [0], [1], [0, 0, 1, 1], [], []>} : vector<8x32xbf16>, vector<32x32xbf16>, vector<8x32xf32> -> vector<8x32xf32>
    %c0_68 = arith.constant 0 : index
    %c0_69 = arith.constant 0 : index
    %c0_70 = arith.constant 0 : index
    %215 = vector.load %arg7[%c0_68, %c0_69, %c0_70] : memref<1x1x32xf32, #tpu.memory_space<vmem>>, vector<1x1x32xf32>
    %216 = vector.shape_cast %215 : vector<1x1x32xf32> to vector<1x32xf32>
    %217 = vector.broadcast %216 : vector<1x32xf32> to vector<8x32xf32>
    %218 = arith.addf %214, %217 : vector<8x32xf32>
    %219 = arith.addf %3, %218 : vector<8x32xf32>
    %cst_71 = arith.constant dense<0.000000e+00> : vector<8xf32>
    %220 = vector.multi_reduction <add>, %219, %cst_71 [1] : vector<8x32xf32> to vector<8xf32>
    %221 = vector.shape_cast %220 : vector<8xf32> to vector<8x1xf32>
    %cst_72 = arith.constant 3.200000e+01 : f32
    %222 = vector.broadcast %cst_72 : f32 to vector<8x1xf32>
    %223 = arith.divf %221, %222 : vector<8x1xf32>
    %224 = vector.broadcast %223 : vector<8x1xf32> to vector<8x32xf32>
    %225 = arith.subf %219, %224 : vector<8x32xf32>
    %226 = arith.mulf %225, %225 : vector<8x32xf32>
    %cst_73 = arith.constant dense<0.000000e+00> : vector<8xf32>
    %227 = vector.multi_reduction <add>, %226, %cst_73 [1] : vector<8x32xf32> to vector<8xf32>
    %228 = vector.shape_cast %227 : vector<8xf32> to vector<8x1xf32>
    %cst_74 = arith.constant 0.0322580636 : f32
    %229 = vector.broadcast %cst_74 : f32 to vector<8x1xf32>
    %230 = arith.mulf %228, %229 : vector<8x1xf32>
    %231 = vector.broadcast %223 : vector<8x1xf32> to vector<8x32xf32>
    %232 = arith.subf %219, %231 : vector<8x32xf32>
    %233 = math.rsqrt %230 : vector<8x1xf32>
    %234 = vector.broadcast %233 : vector<8x1xf32> to vector<8x32xf32>
    %235 = arith.mulf %232, %234 : vector<8x32xf32>
    %236 = arith.truncf %235 : vector<8x32xf32> to vector<8x32xbf16>
    %c0_75 = arith.constant 0 : index
    %c0_76 = arith.constant 0 : index
    %c0_77 = arith.constant 0 : index
    %237 = vector.load %arg8[%c0_75, %c0_76, %c0_77] : memref<1x32x64xbf16, #tpu.memory_space<vmem>>, vector<1x32x64xbf16>
    %238 = vector.shape_cast %237 : vector<1x32x64xbf16> to vector<32x64xbf16>
    %cst_78 = arith.constant dense<0.000000e+00> : vector<8x64xf32>
    %239 = tpu.matmul %236, %238, %cst_78 {dimension_numbers = #tpu.dot_dimension_numbers<[1], [0], [0], [1], [0, 0, 1, 1], [], []>} : vector<8x32xbf16>, vector<32x64xbf16>, vector<8x64xf32> -> vector<8x64xf32>
    %c0_79 = arith.constant 0 : index
    %c0_80 = arith.constant 0 : index
    %c0_81 = arith.constant 0 : index
    %240 = vector.load %arg9[%c0_79, %c0_80, %c0_81] : memref<1x1x64xf32, #tpu.memory_space<vmem>>, vector<1x1x64xf32>
    %241 = vector.shape_cast %240 : vector<1x1x64xf32> to vector<1x64xf32>
    %242 = vector.broadcast %241 : vector<1x64xf32> to vector<8x64xf32>
    %243 = arith.addf %239, %242 : vector<8x64xf32>
    %cst_82 = arith.constant 0.000000e+00 : f32
    %244 = vector.broadcast %cst_82 : f32 to vector<8x64xf32>
    %245 = arith.maximumf %243, %244 : vector<8x64xf32>
    %246 = arith.truncf %245 : vector<8x64xf32> to vector<8x64xbf16>
    %c0_83 = arith.constant 0 : index
    %c0_84 = arith.constant 0 : index
    %c0_85 = arith.constant 0 : index
    %247 = vector.load %arg10[%c0_83, %c0_84, %c0_85] : memref<1x64x32xbf16, #tpu.memory_space<vmem>>, vector<1x64x32xbf16>
    %248 = vector.shape_cast %247 : vector<1x64x32xbf16> to vector<64x32xbf16>
    %cst_86 = arith.constant dense<0.000000e+00> : vector<8x32xf32>
    %249 = tpu.matmul %246, %248, %cst_86 {dimension_numbers = #tpu.dot_dimension_numbers<[1], [0], [0], [1], [0, 0, 1, 1], [], []>} : vector<8x64xbf16>, vector<64x32xbf16>, vector<8x32xf32> -> vector<8x32xf32>
    %c0_87 = arith.constant 0 : index
    %c0_88 = arith.constant 0 : index
    %c0_89 = arith.constant 0 : index
    %250 = vector.load %arg11[%c0_87, %c0_88, %c0_89] : memref<1x1x32xf32, #tpu.memory_space<vmem>>, vector<1x1x32xf32>
    %251 = vector.shape_cast %250 : vector<1x1x32xf32> to vector<1x32xf32>
    %252 = vector.broadcast %251 : vector<1x32xf32> to vector<8x32xf32>
    %253 = arith.addf %249, %252 : vector<8x32xf32>
    %254 = arith.addf %235, %253 : vector<8x32xf32>
    %cst_90 = arith.constant dense<0.000000e+00> : vector<8xf32>
    %255 = vector.multi_reduction <add>, %254, %cst_90 [1] : vector<8x32xf32> to vector<8xf32>
    %256 = vector.shape_cast %255 : vector<8xf32> to vector<8x1xf32>
    %cst_91 = arith.constant 3.200000e+01 : f32
    %257 = vector.broadcast %cst_91 : f32 to vector<8x1xf32>
    %258 = arith.divf %256, %257 : vector<8x1xf32>
    %259 = vector.broadcast %258 : vector<8x1xf32> to vector<8x32xf32>
    %260 = arith.subf %254, %259 : vector<8x32xf32>
    %261 = arith.mulf %260, %260 : vector<8x32xf32>
    %cst_92 = arith.constant dense<0.000000e+00> : vector<8xf32>
    %262 = vector.multi_reduction <add>, %261, %cst_92 [1] : vector<8x32xf32> to vector<8xf32>
    %263 = vector.shape_cast %262 : vector<8xf32> to vector<8x1xf32>
    %cst_93 = arith.constant 0.0322580636 : f32
    %264 = vector.broadcast %cst_93 : f32 to vector<8x1xf32>
    %265 = arith.mulf %263, %264 : vector<8x1xf32>
    %266 = vector.broadcast %258 : vector<8x1xf32> to vector<8x32xf32>
    %267 = arith.subf %254, %266 : vector<8x32xf32>
    %268 = math.rsqrt %265 : vector<8x1xf32>
    %269 = vector.broadcast %268 : vector<8x1xf32> to vector<8x32xf32>
    %270 = arith.mulf %267, %269 : vector<8x32xf32>
    %c0_94 = arith.constant 0 : index
    %c0_95 = arith.constant 0 : index
    %271 = vector.load %arg15[%c0_94, %c0_95] : memref<8x32xf32, #tpu.memory_space<vmem>>, vector<8x32xf32>
    tpu.vector_store %arg15[%c0_94, %c0_95], %270 {strides = array<i32>} : memref<8x32xf32, #tpu.memory_space<vmem>>, vector<8x32xf32>,
    %c2_i32_96 = arith.constant 2 : i32
    %272 = arith.cmpi eq, %arg1, %c2_i32_96 : i32
    %273 = arith.extui %272 : i1 to i32
    %c0_i32_97 = arith.constant 0 : i32
    %274 = arith.cmpi ne, %273, %c0_i32_97 : i32
    scf.if %274 {
      %275 = arith.truncf %270 : vector<8x32xf32> to vector<8x32xbf16>
      %c0_98 = arith.constant 0 : index
      %c0_99 = arith.constant 0 : index
      %276 = vector.load %arg12[%c0_98, %c0_99] : memref<32x128xbf16, #tpu.memory_space<vmem>>, vector<32x128xbf16>
      %cst_100 = arith.constant dense<0.000000e+00> : vector<8x128xf32>
      %277 = tpu.matmul %275, %276, %cst_100 {dimension_numbers = #tpu.dot_dimension_numbers<[1], [0], [0], [1], [0, 0, 1, 1], [], []>} : vector<8x32xbf16>, vector<32x128xbf16>, vector<8x128xf32> -> vector<8x128xf32>
      %c0_101 = arith.constant 0 : index
      %c0_102 = arith.constant 0 : index
      %278 = vector.load %arg13[%c0_101, %c0_102] : memref<1x128xf32, #tpu.memory_space<vmem>>, vector<1x128xf32>
      %279 = vector.broadcast %278 : vector<1x128xf32> to vector<8x128xf32>
      %280 = arith.addf %277, %279 : vector<8x128xf32>
      %cst_103 = arith.constant dense<0xFF800000> : vector<8xf32>
      %281 = vector.multi_reduction <maximumf>, %280, %cst_103 [1] : vector<8x128xf32> to vector<8xf32>
      %282 = vector.shape_cast %281 : vector<8xf32> to vector<8x1xf32>
      %283 = vector.broadcast %282 : vector<8x1xf32> to vector<8x128xf32>
      %284 = arith.subf %280, %283 : vector<8x128xf32>
      %285 = math.exp %284 : vector<8x128xf32>
      %cst_104 = arith.constant dense<0.000000e+00> : vector<8xf32>
      %286 = vector.multi_reduction <add>, %285, %cst_104 [1] : vector<8x128xf32> to vector<8xf32>
      %287 = vector.shape_cast %286 : vector<8xf32> to vector<8x1xf32>
      %288 = vector.broadcast %287 : vector<8x1xf32> to vector<8x128xf32>
      %289 = arith.divf %285, %288 : vector<8x128xf32>
      %c0_105 = arith.constant 0 : index
      %c0_106 = arith.constant 0 : index
      %290 = vector.load %arg14[%c0_105, %c0_106] : memref<8x128xf32, #tpu.memory_space<vmem>>, vector<8x128xf32>
      tpu.vector_store %arg14[%c0_105, %c0_106], %289 {strides = array<i32>} : memref<8x128xf32, #tpu.memory_space<vmem>>, vector<8x128xf32>,
    } else {
    }
    return
  }
  func.func @transform_0(%arg0: i32, %arg1: i32) -> (i32, i32) {
    %c0_i32 = arith.constant 0 : i32
    %c0_i32_0 = arith.constant 0 : i32
    return %arg0, %c0_i32 : i32, i32
  }
  func.func @transform_1(%arg0: i32, %arg1: i32) -> (i32, i32, i32) {
    %c0_i32 = arith.constant 0 : i32
    %c0_i32_0 = arith.constant 0 : i32
    %c0_i32_1 = arith.constant 0 : i32
    %c0_i32_2 = arith.constant 0 : i32
    return %c0_i32, %c0_i32_0, %c0_i32_1 : i32, i32, i32
  }
  func.func @transform_2(%arg0: i32, %arg1: i32) -> (i32, i32, i32) {
    %c0_i32 = arith.constant 0 : i32
    %c0_i32_0 = arith.constant 0 : i32
    %c0_i32_1 = arith.constant 0 : i32
    return %arg1, %c0_i32, %c0_i32_0 : i32, i32, i32
  }
  func.func @transform_3(%arg0: i32, %arg1: i32) -> (i32, i32, i32) {
    %c0_i32 = arith.constant 0 : i32
    %c0_i32_0 = arith.constant 0 : i32
    %c0_i32_1 = arith.constant 0 : i32
    return %arg1, %c0_i32, %c0_i32_0 : i32, i32, i32
  }
  func.func @transform_4(%arg0: i32, %arg1: i32) -> (i32, i32, i32) {
    %c0_i32 = arith.constant 0 : i32
    %c0_i32_0 = arith.constant 0 : i32
    %c0_i32_1 = arith.constant 0 : i32
    return %arg1, %c0_i32, %c0_i32_0 : i32, i32, i32
  }
  func.func @transform_5(%arg0: i32, %arg1: i32) -> (i32, i32, i32) {
    %c0_i32 = arith.constant 0 : i32
    %c0_i32_0 = arith.constant 0 : i32
    %c0_i32_1 = arith.constant 0 : i32
    return %arg1, %c0_i32, %c0_i32_0 : i32, i32, i32
  }
  func.func @transform_6(%arg0: i32, %arg1: i32) -> (i32, i32, i32) {
    %c0_i32 = arith.constant 0 : i32
    %c0_i32_0 = arith.constant 0 : i32
    %c0_i32_1 = arith.constant 0 : i32
    return %arg1, %c0_i32, %c0_i32_0 : i32, i32, i32
  }
  func.func @transform_7(%arg0: i32, %arg1: i32) -> (i32, i32, i32) {
    %c0_i32 = arith.constant 0 : i32
    %c0_i32_0 = arith.constant 0 : i32
    %c0_i32_1 = arith.constant 0 : i32
    return %arg1, %c0_i32, %c0_i32_0 : i32, i32, i32
  }
  func.func @transform_8(%arg0: i32, %arg1: i32) -> (i32, i32, i32) {
    %c0_i32 = arith.constant 0 : i32
    %c0_i32_0 = arith.constant 0 : i32
    %c0_i32_1 = arith.constant 0 : i32
    return %arg1, %c0_i32, %c0_i32_0 : i32, i32, i32
  }
  func.func @transform_9(%arg0: i32, %arg1: i32) -> (i32, i32, i32) {
    %c0_i32 = arith.constant 0 : i32
    %c0_i32_0 = arith.constant 0 : i32
    %c0_i32_1 = arith.constant 0 : i32
    return %arg1, %c0_i32, %c0_i32_0 : i32, i32, i32
  }
  func.func @transform_10(%arg0: i32, %arg1: i32) -> (i32, i32) {
    %c0_i32 = arith.constant 0 : i32
    %c0_i32_0 = arith.constant 0 : i32
    %c0_i32_1 = arith.constant 0 : i32
    return %c0_i32, %c0_i32_0 : i32, i32
  }
  func.func @transform_11(%arg0: i32, %arg1: i32) -> (i32, i32) {
    %c0_i32 = arith.constant 0 : i32
    %c0_i32_0 = arith.constant 0 : i32
    %c0_i32_1 = arith.constant 0 : i32
    return %c0_i32, %c0_i32_0 : i32, i32
  }
  func.func @transform_12(%arg0: i32, %arg1: i32) -> (i32, i32) {
    %c0_i32 = arith.constant 0 : i32
    %c0_i32_0 = arith.constant 0 : i32
    return %arg0, %c0_i32 : i32, i32
  }
}

</mosaic_0001>

<llo_original>
// kernel: _lambda_.1
$region0: #{_lambda_.1}
  #allocation0 [shape = 'u32[]', space=smem, size = 0x4, offset = 0x4, fixed_abs, tag = 'smem constant byte address 0x4 - core index']
  #allocation1 [shape = 'u32[144,128]{1,0:T(1,128)}', space=vmem, size = 0x12000, scoped, tag = 'internal scratch']
  #allocation2 [shape = 'f32[8,32]{1,0:T(8,128)}', space=vmem, size = 0x1000, scoped, tag = 'scratch operand']
  #allocation3 [shape = 'f32[8,32]{1,0:T(8,128)}', space=vmem, size = 0x1000, scoped, tag = 'scratch operand']
  %s0 = inlined_call_operand.vmem [shape: f32[16,32], index: 0, kind: input, shape index: {}]
  %s1 = inlined_call_operand.vmem [shape: bf16[4,8,8], index: 1, kind: input, shape index: {}]
  %s2 = inlined_call_operand.vmem [shape: bf16[3,32,32], index: 2, kind: input, shape index: {}]
  %s3 = inlined_call_operand.vmem [shape: f32[3,1,32], index: 3, kind: input, shape index: {}]
  %s4 = inlined_call_operand.vmem [shape: bf16[3,32,32], index: 4, kind: input, shape index: {}]
  %s5 = inlined_call_operand.vmem [shape: f32[3,1,32], index: 5, kind: input, shape index: {}]
  %s6 = inlined_call_operand.vmem [shape: bf16[3,32,64], index: 6, kind: input, shape index: {}]
  %s7 = inlined_call_operand.vmem [shape: f32[3,1,64], index: 7, kind: input, shape index: {}]
  %s8 = inlined_call_operand.vmem [shape: bf16[3,64,32], index: 8, kind: input, shape index: {}]
  %s9 = inlined_call_operand.vmem [shape: f32[3,1,32], index: 9, kind: input, shape index: {}]
  %s10 = inlined_call_operand.vmem [shape: bf16[32,128], index: 10, kind: input, shape index: {}]
  %s11 = inlined_call_operand.vmem [shape: f32[1,128], index: 11, kind: input, shape index: {}]
  %s12 = inlined_call_operand.vmem [shape: f32[16,128], index: 12, kind: output, shape index: {}]
  %s13 = sld [smem:[#allocation0]]
  $region89: #{_lambda_.1} parent=0
    _
  %s15 = ssub.s32 1, %s13
  %s16 = scalar_select 0, %s15, %s13
  loop: start=0, step=1, limit=8
  $region2: #{_lambda_.1} parent=0 // loop_pre_header
    _
  $region3: #{_lambda_.1} parent=0 // loop_header
    %s18 = sphi 0, %s22
    %p19 = scmp.ge.s32.totalorder %s18, 8
    %s25 = sphi 0, %s37
    %s26 = sphi 0, %s33
    %s27 = sphi 0, %s25
    %s28 = sphi 0, %s26
    %s29 = sphi 0, %s27
    %s30 = sphi 0, %s28
    %s40 = sphi 0, %s42
    %s43 = sphi 0, %s40
    %s44 = sphi 0, %s43
    %s60 = sphi 0, %s44
    %s64 = sphi 0, %s64
    %s66 = sphi 0, %s64
    %s67 = sphi 0, %s66
    %s81 = sphi 0, %s67
    %s87 = sphi 0, %s89
    %s90 = sphi 0, %s87
    %s91 = sphi 0, %s90
    %s107 = sphi 0, %s91
    %s113 = sphi 0, %s115
    %s116 = sphi 0, %s113
    %s117 = sphi 0, %s116
    %s133 = sphi 0, %s117
    %s139 = sphi 0, %s141
    %s142 = sphi 0, %s139
    %s143 = sphi 0, %s142
    %s159 = sphi 0, %s143
    %s165 = sphi 0, %s167
    %s168 = sphi 0, %s165
    %s169 = sphi 0, %s168
    %s185 = sphi 0, %s169
    %s191 = sphi 0, %s193
    %s194 = sphi 0, %s191
    %s195 = sphi 0, %s194
    %s211 = sphi 0, %s195
    %s217 = sphi 0, %s219
    %s220 = sphi 0, %s217
    %s221 = sphi 0, %s220
    %s237 = sphi 0, %s221
    %s243 = sphi 0, %s245
    %s246 = sphi 0, %s243
    %s247 = sphi 0, %s246
    %s263 = sphi 0, %s247
    %s269 = sphi 0, %s271
    %s272 = sphi 0, %s269
    %s273 = sphi 0, %s272
    %s289 = sphi 0, %s273
    %s293 = sphi 0, %s293
    %s295 = sphi 0, %s293
    %s296 = sphi 0, %s295
    %s310 = sphi 0, %s296
    %s314 = sphi 0, %s314
    %s316 = sphi 0, %s314
    %s317 = sphi 0, %s316
    %s331 = sphi 0, %s317
    %s337 = sphi 0, %s339
    %s340 = sphi 0, %s337
    %s341 = sphi 0, %s340
    %s357 = sphi 0, %s341
  $region4: #{_lambda_.1} parent=0 // loop_header_branch
    %21 = sbr.rel (%p19) target = $region8
  $region5: #{_lambda_.1} parent=0 // loop_body
    %s23 = ssub.s32 %s18, 1
    %s24 = ssub.s32 %s18, 2
    %s31 = sadd.s32 1, %s26
    %p32 = scmp.ge.s32.totalorder %s31, 3
    %s33 = scalar_select %p32, 0, %s31
    %s34 = sadd.s32 1, %s25
    %s35 = scalar_select %p32, %s34, %s25
    %p36 = scmp.ge.s32.totalorder %s35, 2
    %s37 = scalar_select %p36, 0, %s35
    %s38 = ssub.s32 %s25, %s37
    %p39 = scmp.eq.s32.totalorder %s38, 0
    %s41 = sadd.s32 %s40, 1
    %s42 = scalar_select %p39, %s40, %s41
    %p45 = pneg %p39
    %p46 = scmp.eq.s32.totalorder %s18, 5
    %p47 = por %p45, %p46
    %p48 = scmp.ne.s32.totalorder %s40, %s43
    %p49 = scmp.eq.s32.totalorder %s18, 0
    %p50 = por %p48, %p49
    %p51 = scmp.ne.s32.totalorder %s40, %s43
    %p52 = scmp.eq.s32.totalorder %s23, 5
    %p53 = por %p51, %p52
    %p54 = scmp.ne.s32.totalorder %s43, %s44
    %p55 = scmp.eq.s32.totalorder %s23, 0
    %p56 = por %p54, %p55
    %p57 = scmp.ne.s32.totalorder %s43, %s44
    %p58 = scmp.eq.s32.totalorder %s24, 5
    %p59 = por %p57, %p58
    %p61 = scmp.ne.s32.totalorder %s44, %s60
    %p62 = scmp.eq.s32.totalorder %s24, 0
    %p63 = por %p61, %p62
    %s65 = sadd.s32 %s64, 1
    %p68 = scmp.eq.s32.totalorder %s18, 5
    %p69 = scmp.ne.s32.totalorder %s64, %s66
    %p70 = scmp.eq.s32.totalorder %s18, 0
    %p71 = por %p69, %p70
    %p72 = scmp.ne.s32.totalorder %s64, %s66
    %p73 = scmp.eq.s32.totalorder %s23, 5
    %p74 = por %p72, %p73
    %p75 = scmp.ne.s32.totalorder %s66, %s67
    %p76 = scmp.eq.s32.totalorder %s23, 0
    %p77 = por %p75, %p76
    %p78 = scmp.ne.s32.totalorder %s66, %s67
    %p79 = scmp.eq.s32.totalorder %s24, 5
    %p80 = por %p78, %p79
    %p82 = scmp.ne.s32.totalorder %s67, %s81
    %p83 = scmp.eq.s32.totalorder %s24, 0
    %p84 = por %p82, %p83
    %s85 = ssub.s32 %s26, %s33
    %p86 = scmp.eq.s32.totalorder %s85, 0
    %s88 = sadd.s32 %s87, 1
    %s89 = scalar_select %p86, %s87, %s88
    %p92 = pneg %p86
    %p93 = scmp.eq.s32.totalorder %s18, 5
    %p94 = por %p92, %p93
    %p95 = scmp.ne.s32.totalorder %s87, %s90
    %p96 = scmp.eq.s32.totalorder %s18, 0
    %p97 = por %p95, %p96
    %p98 = scmp.ne.s32.totalorder %s87, %s90
    %p99 = scmp.eq.s32.totalorder %s23, 5
    %p100 = por %p98, %p99
    %p101 = scmp.ne.s32.totalorder %s90, %s91
    %p102 = scmp.eq.s32.totalorder %s23, 0
    %p103 = por %p101, %p102
    %p104 = scmp.ne.s32.totalorder %s90, %s91
    %p105 = scmp.eq.s32.totalorder %s24, 5
    %p106 = por %p104, %p105
    %p108 = scmp.ne.s32.totalorder %s91, %s107
    %p109 = scmp.eq.s32.totalorder %s24, 0
    %p110 = por %p108, %p109
    %s111 = ssub.s32 %s26, %s33
    %p112 = scmp.eq.s32.totalorder %s111, 0
    %s114 = sadd.s32 %s113, 1
    %s115 = scalar_select %p112, %s113, %s114
    %p118 = pneg %p112
    %p119 = scmp.eq.s32.totalorder %s18, 5
    %p120 = por %p118, %p119
    %p121 = scmp.ne.s32.totalorder %s113, %s116
    %p122 = scmp.eq.s32.totalorder %s18, 0
    %p123 = por %p121, %p122
    %p124 = scmp.ne.s32.totalorder %s113, %s116
    %p125 = scmp.eq.s32.totalorder %s23, 5
    %p126 = por %p124, %p125
    %p127 = scmp.ne.s32.totalorder %s116, %s117
    %p128 = scmp.eq.s32.totalorder %s23, 0
    %p129 = por %p127, %p128
    %p130 = scmp.ne.s32.totalorder %s116, %s117
    %p131 = scmp.eq.s32.totalorder %s24, 5
    %p132 = por %p130, %p131
    %p134 = scmp.ne.s32.totalorder %s117, %s133
    %p135 = scmp.eq.s32.totalorder %s24, 0
    %p136 = por %p134, %p135
    %s137 = ssub.s32 %s26, %s33
    %p138 = scmp.eq.s32.totalorder %s137, 0
    %s140 = sadd.s32 %s139, 1
    %s141 = scalar_select %p138, %s139, %s140
    %p144 = pneg %p138
    %p145 = scmp.eq.s32.totalorder %s18, 5
    %p146 = por %p144, %p145
    %p147 = scmp.ne.s32.totalorder %s139, %s142
    %p148 = scmp.eq.s32.totalorder %s18, 0
    %p149 = por %p147, %p148
    %p150 = scmp.ne.s32.totalorder %s139, %s142
    %p151 = scmp.eq.s32.totalorder %s23, 5
    %p152 = por %p150, %p151
    %p153 = scmp.ne.s32.totalorder %s142, %s143
    %p154 = scmp.eq.s32.totalorder %s23, 0
    %p155 = por %p153, %p154
    %p156 = scmp.ne.s32.totalorder %s142, %s143
    %p157 = scmp.eq.s32.totalorder %s24, 5
    %p158 = por %p156, %p157
    %p160 = scmp.ne.s32.totalorder %s143, %s159
    %p161 = scmp.eq.s32.totalorder %s24, 0
    %p162 = por %p160, %p161
    %s163 = ssub.s32 %s26, %s33
    %p164 = scmp.eq.s32.totalorder %s163, 0
    %s166 = sadd.s32 %s165, 1
    %s167 = scalar_select %p164, %s165, %s166
    %p170 = pneg %p164
    %p171 = scmp.eq.s32.totalorder %s18, 5
    %p172 = por %p170, %p171
    %p173 = scmp.ne.s32.totalorder %s165, %s168
    %p174 = scmp.eq.s32.totalorder %s18, 0
    %p175 = por %p173, %p174
    %p176 = scmp.ne.s32.totalorder %s165, %s168
    %p177 = scmp.eq.s32.totalorder %s23, 5
    %p178 = por %p176, %p177
    %p179 = scmp.ne.s32.totalorder %s168, %s169
    %p180 = scmp.eq.s32.totalorder %s23, 0
    %p181 = por %p179, %p180
    %p182 = scmp.ne.s32.totalorder %s168, %s169
    %p183 = scmp.eq.s32.totalorder %s24, 5
    %p184 = por %p182, %p183
    %p186 = scmp.ne.s32.totalorder %s169, %s185
    %p187 = scmp.eq.s32.totalorder %s24, 0
    %p188 = por %p186, %p187
    %s189 = ssub.s32 %s26, %s33
    %p190 = scmp.eq.s32.totalorder %s189, 0
    %s192 = sadd.s32 %s191, 1
    %s193 = scalar_select %p190, %s191, %s192
    %p196 = pneg %p190
    %p197 = scmp.eq.s32.totalorder %s18, 5
    %p198 = por %p196, %p197
    %p199 = scmp.ne.s32.totalorder %s191, %s194
    %p200 = scmp.eq.s32.totalorder %s18, 0
    %p201 = por %p199, %p200
    %p202 = scmp.ne.s32.totalorder %s191, %s194
    %p203 = scmp.eq.s32.totalorder %s23, 5
    %p204 = por %p202, %p203
    %p205 = scmp.ne.s32.totalorder %s194, %s195
    %p206 = scmp.eq.s32.totalorder %s23, 0
    %p207 = por %p205, %p206
    %p208 = scmp.ne.s32.totalorder %s194, %s195
    %p209 = scmp.eq.s32.totalorder %s24, 5
    %p210 = por %p208, %p209
    %p212 = scmp.ne.s32.totalorder %s195, %s211
    %p213 = scmp.eq.s32.totalorder %s24, 0
    %p214 = por %p212, %p213
    %s215 = ssub.s32 %s26, %s33
    %p216 = scmp.eq.s32.totalorder %s215, 0
    %s218 = sadd.s32 %s217, 1
    %s219 = scalar_select %p216, %s217, %s218
    %p222 = pneg %p216
    %p223 = scmp.eq.s32.totalorder %s18, 5
    %p224 = por %p222, %p223
    %p225 = scmp.ne.s32.totalorder %s217, %s220
    %p226 = scmp.eq.s32.totalorder %s18, 0
    %p227 = por %p225, %p226
    %p228 = scmp.ne.s32.totalorder %s217, %s220
    %p229 = scmp.eq.s32.totalorder %s23, 5
    %p230 = por %p228, %p229
    %p231 = scmp.ne.s32.totalorder %s220, %s221
    %p232 = scmp.eq.s32.totalorder %s23, 0
    %p233 = por %p231, %p232
    %p234 = scmp.ne.s32.totalorder %s220, %s221
    %p235 = scmp.eq.s32.totalorder %s24, 5
    %p236 = por %p234, %p235
    %p238 = scmp.ne.s32.totalorder %s221, %s237
    %p239 = scmp.eq.s32.totalorder %s24, 0
    %p240 = por %p238, %p239
    %s241 = ssub.s32 %s26, %s33
    %p242 = scmp.eq.s32.totalorder %s241, 0
    %s244 = sadd.s32 %s243, 1
    %s245 = scalar_select %p242, %s243, %s244
    %p248 = pneg %p242
    %p249 = scmp.eq.s32.totalorder %s18, 5
    %p250 = por %p248, %p249
    %p251 = scmp.ne.s32.totalorder %s243, %s246
    %p252 = scmp.eq.s32.totalorder %s18, 0
    %p253 = por %p251, %p252
    %p254 = scmp.ne.s32.totalorder %s243, %s246
    %p255 = scmp.eq.s32.totalorder %s23, 5
    %p256 = por %p254, %p255
    %p257 = scmp.ne.s32.totalorder %s246, %s247
    %p258 = scmp.eq.s32.totalorder %s23, 0
    %p259 = por %p257, %p258
    %p260 = scmp.ne.s32.totalorder %s246, %s247
    %p261 = scmp.eq.s32.totalorder %s24, 5
    %p262 = por %p260, %p261
    %p264 = scmp.ne.s32.totalorder %s247, %s263
    %p265 = scmp.eq.s32.totalorder %s24, 0
    %p266 = por %p264, %p265
    %s267 = ssub.s32 %s26, %s33
    %p268 = scmp.eq.s32.totalorder %s267, 0
    %s270 = sadd.s32 %s269, 1
    %s271 = scalar_select %p268, %s269, %s270
    %p274 = pneg %p268
    %p275 = scmp.eq.s32.totalorder %s18, 5
    %p276 = por %p274, %p275
    %p277 = scmp.ne.s32.totalorder %s269, %s272
    %p278 = scmp.eq.s32.totalorder %s18, 0
    %p279 = por %p277, %p278
    %p280 = scmp.ne.s32.totalorder %s269, %s272
    %p281 = scmp.eq.s32.totalorder %s23, 5
    %p282 = por %p280, %p281
    %p283 = scmp.ne.s32.totalorder %s272, %s273
    %p284 = scmp.eq.s32.totalorder %s23, 0
    %p285 = por %p283, %p284
    %p286 = scmp.ne.s32.totalorder %s272, %s273
    %p287 = scmp.eq.s32.totalorder %s24, 5
    %p288 = por %p286, %p287
    %p290 = scmp.ne.s32.totalorder %s273, %s289
    %p291 = scmp.eq.s32.totalorder %s24, 0
    %p292 = por %p290, %p291
    %s294 = sadd.s32 %s293, 1
    %p297 = scmp.eq.s32.totalorder %s18, 5
    %p298 = scmp.ne.s32.totalorder %s293, %s295
    %p299 = scmp.eq.s32.totalorder %s18, 0
    %p300 = por %p298, %p299
    %p301 = scmp.ne.s32.totalorder %s293, %s295
    %p302 = scmp.eq.s32.totalorder %s23, 5
    %p303 = por %p301, %p302
    %p304 = scmp.ne.s32.totalorder %s295, %s296
    %p305 = scmp.eq.s32.totalorder %s23, 0
    %p306 = por %p304, %p305
    %p307 = scmp.ne.s32.totalorder %s295, %s296
    %p308 = scmp.eq.s32.totalorder %s24, 5
    %p309 = por %p307, %p308
    %p311 = scmp.ne.s32.totalorder %s296, %s310
    %p312 = scmp.eq.s32.totalorder %s24, 0
    %p313 = por %p311, %p312
    %s315 = sadd.s32 %s314, 1
    %p318 = scmp.eq.s32.totalorder %s18, 5
    %p319 = scmp.ne.s32.totalorder %s314, %s316
    %p320 = scmp.eq.s32.totalorder %s18, 0
    %p321 = por %p319, %p320
    %p322 = scmp.ne.s32.totalorder %s314, %s316
    %p323 = scmp.eq.s32.totalorder %s23, 5
    %p324 = por %p322, %p323
    %p325 = scmp.ne.s32.totalorder %s316, %s317
    %p326 = scmp.eq.s32.totalorder %s23, 0
    %p327 = por %p325, %p326
    %p328 = scmp.ne.s32.totalorder %s316, %s317
    %p329 = scmp.eq.s32.totalorder %s24, 5
    %p330 = por %p328, %p329
    %p332 = scmp.ne.s32.totalorder %s317, %s331
    %p333 = scmp.eq.s32.totalorder %s24, 0
    %p334 = por %p332, %p333
    %s335 = ssub.s32 %s25, %s37
    %p336 = scmp.eq.s32.totalorder %s335, 0
    %s338 = sadd.s32 %s337, 1
    %s339 = scalar_select %p336, %s337, %s338
    %p342 = pneg %p336
    %p343 = scmp.eq.s32.totalorder %s18, 5
    %p344 = por %p342, %p343
    %p345 = scmp.ne.s32.totalorder %s337, %s340
    %p346 = scmp.eq.s32.totalorder %s18, 0
    %p347 = por %p345, %p346
    %p348 = scmp.ne.s32.totalorder %s337, %s340
    %p349 = scmp.eq.s32.totalorder %s23, 5
    %p350 = por %p348, %p349
    %p351 = scmp.ne.s32.totalorder %s340, %s341
    %p352 = scmp.eq.s32.totalorder %s23, 0
    %p353 = por %p351, %p352
    %p354 = scmp.ne.s32.totalorder %s340, %s341
    %p355 = scmp.eq.s32.totalorder %s24, 5
    %p356 = por %p354, %p355
    %p358 = scmp.ne.s32.totalorder %s341, %s357
    %p359 = scmp.eq.s32.totalorder %s24, 0
    %p360 = por %p358, %p359
    %p361 = scmp.le.s32.totalorder 1, %s18
    %p362 = scmp.lt.s32.totalorder %s18, 7
    %p363 = pnand %p361, %p362
    %p364 = pneg %p363
    // Predicated region
    $region9: #{_lambda_.1} parent=5 // pred_check
      _
    $region10: #{_lambda_.1} parent=5 // pred_check_branch
      %366 = sbr.rel (%p363) target = $region12
    $region11: #{_lambda_.1} parent=5 // pred_region
      %s367 = ssub.s32 %s18, 1
      // Predicated region
      $region13: #{_lambda_.1} parent=11 // pred_check
        %p368 = pneg %p77
      $region14: #{_lambda_.1} parent=11 // pred_check_branch
        %370 = sbr.rel (%p368) target = $region16
      $region15: #{_lambda_.1} parent=11 // pred_region
        _
      $region16: #{_lambda_.1} parent=11 // pred_fallthru
        _
      // Predicated region
      $region17: #{_lambda_.1} parent=11 // pred_check
        %p371 = pneg %p306
      $region18: #{_lambda_.1} parent=11 // pred_check_branch
        %373 = sbr.rel (%p371) target = $region20
      $region19: #{_lambda_.1} parent=11 // pred_region
        _
      $region20: #{_lambda_.1} parent=11 // pred_fallthru
        _
      // Predicated region
      $region21: #{_lambda_.1} parent=11 // pred_check
        %p374 = pneg %p327
      $region22: #{_lambda_.1} parent=11 // pred_check_branch
        %376 = sbr.rel (%p374) target = $region24
      $region23: #{_lambda_.1} parent=11 // pred_region
        _
      $region24: #{_lambda_.1} parent=11 // pred_fallthru
        _
    $region12: #{_lambda_.1} parent=5 // pred_fallthru
      _
    %p377 = scmp.lt.s32.totalorder %s18, 6
    // Predicated region
    $region25: #{_lambda_.1} parent=5 // pred_check
      %p378 = pneg %p377
    $region26: #{_lambda_.1} parent=5 // pred_check_branch
      %380 = sbr.rel (%p378) target = $region28
    $region27: #{_lambda_.1} parent=5 // pred_region
      // Predicated region
      $region29: #{_lambda_.1} parent=27 // pred_check
        %p381 = pneg %p50
      $region30: #{_lambda_.1} parent=27 // pred_check_branch
        %383 = sbr.rel (%p381) target = $region32
      $region31: #{_lambda_.1} parent=27 // pred_region
        %p384 = scmp.lt.s32.totalorder %s25, 1
        %s385 = scalar_select %p384, %s25, 1
        %s386 = smul.addr %s385, 8
        %s387 = scalar_lea.vmem %s0, %s386
      $region32: #{_lambda_.1} parent=27 // pred_fallthru
        _
      // Predicated region
      $region33: #{_lambda_.1} parent=27 // pred_check
        %p388 = pneg %p97
      $region34: #{_lambda_.1} parent=27 // pred_check_branch
        %390 = sbr.rel (%p388) target = $region36
      $region35: #{_lambda_.1} parent=27 // pred_region
        %p391 = scmp.lt.s32.totalorder %s26, 2
        %s392 = scalar_select %p391, %s26, 2
        %s393 = smul.addr %s392, 4
        %s394 = smul.addr %s393, 4
        %s395 = scalar_lea.vmem %s2, %s394
      $region36: #{_lambda_.1} parent=27 // pred_fallthru
        _
      // Predicated region
      $region37: #{_lambda_.1} parent=27 // pred_check
        %p396 = pneg %p123
      $region38: #{_lambda_.1} parent=27 // pred_check_branch
        %398 = sbr.rel (%p396) target = $region40
      $region39: #{_lambda_.1} parent=27 // pred_region
        %p399 = scmp.lt.s32.totalorder %s26, 2
        %s400 = scalar_select %p399, %s26, 2
        %s401 = scalar_lea.vmem %s3, %s400
      $region40: #{_lambda_.1} parent=27 // pred_fallthru
        _
      // Predicated region
      $region41: #{_lambda_.1} parent=27 // pred_check
        %p402 = pneg %p149
      $region42: #{_lambda_.1} parent=27 // pred_check_branch
        %404 = sbr.rel (%p402) target = $region44
      $region43: #{_lambda_.1} parent=27 // pred_region
        %p405 = scmp.lt.s32.totalorder %s26, 2
        %s406 = scalar_select %p405, %s26, 2
        %s407 = smul.addr %s406, 4
        %s408 = smul.addr %s407, 4
        %s409 = scalar_lea.vmem %s4, %s408
      $region44: #{_lambda_.1} parent=27 // pred_fallthru
        _
      // Predicated region
      $region45: #{_lambda_.1} parent=27 // pred_check
        %p410 = pneg %p175
      $region46: #{_lambda_.1} parent=27 // pred_check_branch
        %412 = sbr.rel (%p410) target = $region48
      $region47: #{_lambda_.1} parent=27 // pred_region
        %p413 = scmp.lt.s32.totalorder %s26, 2
        %s414 = scalar_select %p413, %s26, 2
        %s415 = scalar_lea.vmem %s5, %s414
      $region48: #{_lambda_.1} parent=27 // pred_fallthru
        _
      // Predicated region
      $region49: #{_lambda_.1} parent=27 // pred_check
        %p416 = pneg %p201
      $region50: #{_lambda_.1} parent=27 // pred_check_branch
        %418 = sbr.rel (%p416) target = $region52
      $region51: #{_lambda_.1} parent=27 // pred_region
        %p419 = scmp.lt.s32.totalorder %s26, 2
        %s420 = scalar_select %p419, %s26, 2
        %s421 = smul.addr %s420, 4
        %s422 = smul.addr %s421, 4
        %s423 = scalar_lea.vmem %s6, %s422
      $region52: #{_lambda_.1} parent=27 // pred_fallthru
        _
      // Predicated region
      $region53: #{_lambda_.1} parent=27 // pred_check
        %p424 = pneg %p227
      $region54: #{_lambda_.1} parent=27 // pred_check_branch
        %426 = sbr.rel (%p424) target = $region56
      $region55: #{_lambda_.1} parent=27 // pred_region
        %p427 = scmp.lt.s32.totalorder %s26, 2
        %s428 = scalar_select %p427, %s26, 2
        %s429 = scalar_lea.vmem %s7, %s428
      $region56: #{_lambda_.1} parent=27 // pred_fallthru
        _
      // Predicated region
      $region57: #{_lambda_.1} parent=27 // pred_check
        %p430 = pneg %p253
      $region58: #{_lambda_.1} parent=27 // pred_check_branch
        %432 = sbr.rel (%p430) target = $region60
      $region59: #{_lambda_.1} parent=27 // pred_region
        %p433 = scmp.lt.s32.totalorder %s26, 2
        %s434 = scalar_select %p433, %s26, 2
        %s435 = smul.addr %s434, 8
        %s436 = smul.addr %s435, 4
        %s437 = scalar_lea.vmem %s8, %s436
      $region60: #{_lambda_.1} parent=27 // pred_fallthru
        _
      // Predicated region
      $region61: #{_lambda_.1} parent=27 // pred_check
        %p438 = pneg %p279
      $region62: #{_lambda_.1} parent=27 // pred_check_branch
        %440 = sbr.rel (%p438) target = $region64
      $region63: #{_lambda_.1} parent=27 // pred_region
        %p441 = scmp.lt.s32.totalorder %s26, 2
        %s442 = scalar_select %p441, %s26, 2
        %s443 = scalar_lea.vmem %s9, %s442
      $region64: #{_lambda_.1} parent=27 // pred_fallthru
        _
    $region28: #{_lambda_.1} parent=5 // pred_fallthru
      _
    %p444 = scmp.le.s32.totalorder 1, %s18
    %p445 = scmp.lt.s32.totalorder %s18, 7
    %p446 = pnand %p444, %p445
    %p447 = pneg %p446
    // Predicated region
    $region65: #{_lambda_.1} parent=5 // pred_check
      _
    $region66: #{_lambda_.1} parent=5 // pred_check_branch
      %449 = sbr.rel (%p446) target = $region68
    $region67: #{_lambda_.1} parent=5 // pred_region
      %s450 = ssub.s32 %s18, 1
      %p451 = scmp.lt.s32.totalorder %s27, 1
      %s452 = scalar_select %p451, %s27, 1
      %s453 = smul.addr %s452, 8
      %s454 = scalar_lea.vmem %s0, %s453
      %p455 = pneg %p56
      %p456 = pneg %p53
      %p457 = pneg %p77
      %p458 = pneg %p74
      %p459 = scmp.lt.s32.totalorder %s28, 2
      %s460 = scalar_select %p459, %s28, 2
      %s461 = smul.addr %s460, 4
      %s462 = smul.addr %s461, 4
      %s463 = scalar_lea.vmem %s2, %s462
      %p464 = pneg %p103
      %p465 = pneg %p100
      %p466 = scmp.lt.s32.totalorder %s28, 2
      %s467 = scalar_select %p466, %s28, 2
      %s468 = scalar_lea.vmem %s3, %s467
      %p469 = pneg %p129
      %p470 = pneg %p126
      %p471 = scmp.lt.s32.totalorder %s28, 2
      %s472 = scalar_select %p471, %s28, 2
      %s473 = smul.addr %s472, 4
      %s474 = smul.addr %s473, 4
      %s475 = scalar_lea.vmem %s4, %s474
      %p476 = pneg %p155
      %p477 = pneg %p152
      %p478 = scmp.lt.s32.totalorder %s28, 2
      %s479 = scalar_select %p478, %s28, 2
      %s480 = scalar_lea.vmem %s5, %s479
      %p481 = pneg %p181
      %p482 = pneg %p178
      %p483 = scmp.lt.s32.totalorder %s28, 2
      %s484 = scalar_select %p483, %s28, 2
      %s485 = smul.addr %s484, 4
      %s486 = smul.addr %s485, 4
      %s487 = scalar_lea.vmem %s6, %s486
      %p488 = pneg %p207
      %p489 = pneg %p204
      %p490 = scmp.lt.s32.totalorder %s28, 2
      %s491 = scalar_select %p490, %s28, 2
      %s492 = scalar_lea.vmem %s7, %s491
      %p493 = pneg %p233
      %p494 = pneg %p230
      %p495 = scmp.lt.s32.totalorder %s28, 2
      %s496 = scalar_select %p495, %s28, 2
      %s497 = smul.addr %s496, 8
      %s498 = smul.addr %s497, 4
      %s499 = scalar_lea.vmem %s8, %s498
      %p500 = pneg %p259
      %p501 = pneg %p256
      %p502 = scmp.lt.s32.totalorder %s28, 2
      %s503 = scalar_select %p502, %s28, 2
      %s504 = scalar_lea.vmem %s9, %s503
      %p505 = pneg %p285
      %p506 = pneg %p282
      %p507 = pneg %p306
      %p508 = pneg %p303
      %p509 = pneg %p327
      %p510 = pneg %p324
      %p511 = pneg %p353
      %p512 = pneg %p350
      %p513 = scmp.lt.s32.totalorder %s27, 1
      %s514 = scalar_select %p513, %s27, 1
      %s515 = smul.addr %s514, 8
      %s516 = scalar_lea.vmem %s12, %s515
      %p517 = scmp.lt.s32.totalorder %s27, 1
      %s518 = scalar_select %p517, %s27, 1
      %s519 = smul.addr %s518, 8
      %s520 = scalar_lea.vmem %s0, %s519
      %p521 = scmp.lt.s32.totalorder %s28, 2
      %s522 = scalar_select %p521, %s28, 2
      %s523 = smul.addr %s522, 4
      %s524 = smul.addr %s523, 4
      %s525 = scalar_lea.vmem %s2, %s524
      %p526 = scmp.lt.s32.totalorder %s28, 2
      %s527 = scalar_select %p526, %s28, 2
      %s528 = scalar_lea.vmem %s3, %s527
      %p529 = scmp.lt.s32.totalorder %s28, 2
      %s530 = scalar_select %p529, %s28, 2
      %s531 = smul.addr %s530, 4
      %s532 = smul.addr %s531, 4
      %s533 = scalar_lea.vmem %s4, %s532
      %p534 = scmp.lt.s32.totalorder %s28, 2
      %s535 = scalar_select %p534, %s28, 2
      %s536 = scalar_lea.vmem %s5, %s535
      %p537 = scmp.lt.s32.totalorder %s28, 2
      %s538 = scalar_select %p537, %s28, 2
      %s539 = smul.addr %s538, 4
      %s540 = smul.addr %s539, 4
      %s541 = scalar_lea.vmem %s6, %s540
      %p542 = scmp.lt.s32.totalorder %s28, 2
      %s543 = scalar_select %p542, %s28, 2
      %s544 = scalar_lea.vmem %s7, %s543
      %p545 = scmp.lt.s32.totalorder %s28, 2
      %s546 = scalar_select %p545, %s28, 2
      %s547 = smul.addr %s546, 8
      %s548 = smul.addr %s547, 4
      %s549 = scalar_lea.vmem %s8, %s548
      %p550 = scmp.lt.s32.totalorder %s28, 2
      %s551 = scalar_select %p550, %s28, 2
      %s552 = scalar_lea.vmem %s9, %s551
      %p553 = scmp.lt.s32.totalorder %s27, 1
      %s554 = scalar_select %p553, %s27, 1
      %s555 = smul.addr %s554, 8
      %s556 = scalar_lea.vmem %s12, %s555
      %p558 = scmp.eq.s32.totalorder %s28, 0
      // Predicated region
      $region69: #{_lambda_.1} parent=67 // pred_check
        %p559 = pneg %p558
      $region70: #{_lambda_.1} parent=67 // pred_check_branch
        %561 = sbr.rel (%p559) target = $region72
      $region71: #{_lambda_.1} parent=67 // pred_region
        %v562 = vld [vmem:[%s520] sm:$0xff]
        %vm563 = vcmask 261120
        %564 = vst.msk [vmem:[#allocation2] sm:$0xff] %vm563, %v562
      $region72: #{_lambda_.1} parent=67 // pred_fallthru
        _
      %v565 = vld [vmem:[#allocation2] sm:$0xff]
      %v566 = vpack.c.bf16 %v565, %v565
      %v567 = vld [vmem:[%s525] sm:$0xf]
      %v568 = vld [vmem:[%s525 + $0x4] sm:$0xf]
      %v569 = vld [vmem:[%s525 + $0x8] sm:$0xf]
      %v570 = vld [vmem:[%s525 + $0xc] sm:$0xf]
      %v571 = vld [vmem:[%s528] sm:$0x1]
      %v573 = vlaneseq
      %v574 = vshrl.u32 %v573, 7
      %v575 = vsub.s32 0, %v574
      %v576 = vrot.slane %v571, %v575
      %v582 = vunpack.c.l.b16 %v567
      %v583 = vunpack.c.l.b16 %v568
      %v584 = vunpack.c.l.b16 %v569
      %v585 = vunpack.c.l.b16 %v570
      %v586 = vpack.c.b16 %v583, %v582
      %v587 = vpack.c.b16 %v585, %v584
      %vm590 = vcmask 261120
      %v592 = vsel %vm590, %v566, 0
      %594 = vmatprep.subr.bf16.mxu0 0
      %595 = vmatpush1.bf16.msra.mxu0 %v586
      %596 = vmatprep.subr.bf16.mxu0 0
      %597 = vmatpush1.bf16.msra.mxu0 %v587
      %598 = vmatprep.subr.bf16.mxu0 0
      %599 = vmatpush1.bf16.msra.mxu0 0
      %600 = vmatprep.subr.bf16.mxu0 0
      %601 = vmatpush1.bf16.msra.mxu0 0
      %602 = vmatprep.subr.bf16.mxu0 0
      %603 = vmatpush1.bf16.msra.mxu0 0
      %604 = vmatprep.subr.bf16.mxu0 0
      %605 = vmatpush1.bf16.msra.mxu0 0
      %606 = vmatprep.subr.bf16.mxu0 0
      %607 = vmatpush1.bf16.msra.mxu0 0
      %608 = vmatprep.subr.bf16.mxu0 0
      %609 = vmatpush1.bf16.msra.mxu0 0
      %610 = vmatprep.subr.bf16.mxu0 0
      %611 = vmatpush1.bf16.msra.mxu0 0
      %612 = vmatprep.subr.bf16.mxu0 0
      %613 = vmatpush1.bf16.msra.mxu0 0
      %614 = vmatprep.subr.bf16.mxu0 0
      %615 = vmatpush1.bf16.msra.mxu0 0
      %616 = vmatprep.subr.bf16.mxu0 0
      %617 = vmatpush1.bf16.msra.mxu0 0
      %618 = vmatprep.subr.bf16.mxu0 0
      %619 = vmatpush1.bf16.msra.mxu0 0
      %620 = vmatprep.subr.bf16.mxu0 0
      %621 = vmatpush1.bf16.msra.mxu0 0
      %622 = vmatprep.subr.bf16.mxu0 0
      %623 = vmatpush1.bf16.msra.mxu0 0
      %624 = vmatprep.subr.bf16.mxu0 0
      %625 = vmatpush1.bf16.msra.mxu0 0
      %626 = vmatprep.mubr.bf16.mxu0 0
      %627 = vmatmul.mubr.bf16.gmra.mrb[0].mxu0 %v592
      %v628 = vpop.f32.mrb[0].mxu0
      %v629 = vadd.f32 %v576, %v628
      %v630 = vpop.f32.mrb[0].mxu0
      %v631 = vpop.f32.mrb[0].mxu0
      %v632 = vpop.f32.mrb[0].mxu0
      %633 = vdwg.mxu0
      %v634 = vpack.c.bf16 %v629, %v629
      %v635 = vlaneseq
      %v636 = vshrl.u32 %v635, 7
      %v637 = vld [vmem:[%s1] sm:$0xf]
      %vm638 = vcmask 64512
      %v640 = vsel %vm638, %v637, 0
      %vm642 = vcmask 1043456
      %v644 = vsel %vm642, %v634, 0
      %646 = vmatprep.subr.bf16.mxu0 0
      %647 = vmatpush1.bf16.msra.mxu0 %v644
      %648 = vmatprep.subr.bf16.mxu0 0
      %649 = vmatpush1.bf16.msra.mxu0 0
      %650 = vmatprep.subr.bf16.mxu0 0
      %651 = vmatpush1.bf16.msra.mxu0 0
      %652 = vmatprep.subr.bf16.mxu0 0
      %653 = vmatpush1.bf16.msra.mxu0 0
      %654 = vmatprep.subr.bf16.mxu0 0
      %655 = vmatpush1.bf16.msra.mxu0 0
      %656 = vmatprep.subr.bf16.mxu0 0
      %657 = vmatpush1.bf16.msra.mxu0 0
      %658 = vmatprep.subr.bf16.mxu0 0
      %659 = vmatpush1.bf16.msra.mxu0 0
      %660 = vmatprep.subr.bf16.mxu0 0
      %661 = vmatpush1.bf16.msra.mxu0 0
      %662 = vmatprep.subr.bf16.mxu0 0
      %663 = vmatpush1.bf16.msra.mxu0 0
      %664 = vmatprep.subr.bf16.mxu0 0
      %665 = vmatpush1.bf16.msra.mxu0 0
      %666 = vmatprep.subr.bf16.mxu0 0
      %667 = vmatpush1.bf16.msra.mxu0 0
      %668 = vmatprep.subr.bf16.mxu0 0
      %669 = vmatpush1.bf16.msra.mxu0 0
      %670 = vmatprep.subr.bf16.mxu0 0
      %671 = vmatpush1.bf16.msra.mxu0 0
      %672 = vmatprep.subr.bf16.mxu0 0
      %673 = vmatpush1.bf16.msra.mxu0 0
      %674 = vmatprep.subr.bf16.mxu0 0
      %675 = vmatpush1.bf16.msra.mxu0 0
      %676 = vmatprep.subr.bf16.mxu0 0
      %677 = vmatpush1.bf16.msra.mxu0 0
      %678 = vmatprep.mubr.bf16.mxu0 0
      %679 = vmatmul.mubr.bf16.gmra.mrb[0].mxu0 %v640
      %v680 = vpop.f32.mrb[0].mxu0
      %v681 = vadd.f32 0.0, %v680
      %v682 = vpop.f32.mrb[0].mxu0
      %v683 = vpop.f32.mrb[0].mxu0
      %v684 = vpop.f32.mrb[0].mxu0
      %685 = vdwg.mxu0
      %v686 = vmul.u32 %v636, 4
      %vm687 = vcmp.ge.s32.totalorder %v686, 0
      %vm688 = vcmp.lt.s32.totalorder %v686, 8
      %vm689 = vmand %vm687, %vm688
      %v690 = vsel %vm689, 1, 0
      %v691 = vcvt.s32.f32 %v690
      %v692 = vmul.f32 %v681, %v691
      %v693 = vadd.f32 %v692, 0.0
      %vm694 = vcmp.ge.s32.totalorder %v686, 8
      %vm695 = vcmp.lt.s32.totalorder %v686, 16
      %vm696 = vmand %vm694, %vm695
      %v697 = vsel %vm696, 1, 0
      %v698 = vcvt.s32.f32 %v697
      %v699 = vmul.f32 %v681, %v698
      %701 = vrot.lane.b32.xlu0 %v699, 120
      %v702 = vpop.permute.xlu0 %701
      %v704 = vadd.f32 %v693, %v702
      %vm705 = vcmp.ge.s32.totalorder %v686, 16
      %vm706 = vcmp.lt.s32.totalorder %v686, 24
      %vm707 = vmand %vm705, %vm706
      %v708 = vsel %vm707, 1, 0
      %v709 = vcvt.s32.f32 %v708
      %v710 = vmul.f32 %v681, %v709
      %712 = vrot.lane.b32.xlu0 %v710, 112
      %v713 = vpop.permute.xlu0 %712
      %v715 = vadd.f32 %v704, %v713
      %vm716 = vcmp.ge.s32.totalorder %v686, 24
      %vm717 = vcmp.lt.s32.totalorder %v686, 32
      %vm718 = vmand %vm716, %vm717
      %v719 = vsel %vm718, 1, 0
      %v720 = vcvt.s32.f32 %v719
      %v721 = vmul.f32 %v681, %v720
      %723 = vrot.lane.b32.xlu0 %v721, 104
      %v724 = vpop.permute.xlu0 %723
      %v726 = vadd.f32 %v715, %v724
      %727 = vst.msk [vmem:[#allocation3] sm:$0xff] %vm638, %v726
      %s728 = scalar_lea.vmem %s1, 4
      %v729 = vld [vmem:[%s728] sm:$0xf]
      %v731 = vsel %vm638, %v729, 0
      %733 = vmatprep.subr.bf16.mxu0 0
      %734 = vmatpush1.bf16.msra.mxu0 %v644
      %735 = vmatprep.subr.bf16.mxu0 0
      %736 = vmatpush1.bf16.msra.mxu0 0
      %737 = vmatprep.subr.bf16.mxu0 0
      %738 = vmatpush1.bf16.msra.mxu0 0
      %739 = vmatprep.subr.bf16.mxu0 0
      %740 = vmatpush1.bf16.msra.mxu0 0
      %741 = vmatprep.subr.bf16.mxu0 0
      %742 = vmatpush1.bf16.msra.mxu0 0
      %743 = vmatprep.subr.bf16.mxu0 0
      %744 = vmatpush1.bf16.msra.mxu0 0
      %745 = vmatprep.subr.bf16.mxu0 0
      %746 = vmatpush1.bf16.msra.mxu0 0
      %747 = vmatprep.subr.bf16.mxu0 0
      %748 = vmatpush1.bf16.msra.mxu0 0
      %749 = vmatprep.subr.bf16.mxu0 0
      %750 = vmatpush1.bf16.msra.mxu0 0
      %751 = vmatprep.subr.bf16.mxu0 0
      %752 = vmatpush1.bf16.msra.mxu0 0
      %753 = vmatprep.subr.bf16.mxu0 0
      %754 = vmatpush1.bf16.msra.mxu0 0
      %755 = vmatprep.subr.bf16.mxu0 0
      %756 = vmatpush1.bf16.msra.mxu0 0
      %757 = vmatprep.subr.bf16.mxu0 0
      %758 = vmatpush1.bf16.msra.mxu0 0
      %759 = vmatprep.subr.bf16.mxu0 0
      %760 = vmatpush1.bf16.msra.mxu0 0
      %761 = vmatprep.subr.bf16.mxu0 0
      %762 = vmatpush1.bf16.msra.mxu0 0
      %763 = vmatprep.subr.bf16.mxu0 0
      %764 = vmatpush1.bf16.msra.mxu0 0
      %765 = vmatprep.mubr.bf16.mxu0 0
      %766 = vmatmul.mubr.bf16.gmra.mrb[0].mxu0 %v731
      %v767 = vpop.f32.mrb[0].mxu0
      %v768 = vadd.f32 0.0, %v767
      %v769 = vpop.f32.mrb[0].mxu0
      %v770 = vpop.f32.mrb[0].mxu0
      %v771 = vpop.f32.mrb[0].mxu0
      %772 = vdwg.mxu0
      %v773 = vadd.s32 %v686, 1
      %vm774 = vcmp.ge.s32.totalorder %v773, 0
      %vm775 = vcmp.lt.s32.totalorder %v773, 8
      %vm776 = vmand %vm774, %vm775
      %v777 = vsel %vm776, 1, 0
      %v778 = vcvt.s32.f32 %v777
      %v779 = vmul.f32 %v768, %v778
      %v780 = vadd.f32 %v779, 0.0
      %vm781 = vcmp.ge.s32.totalorder %v773, 8
      %vm782 = vcmp.lt.s32.totalorder %v773, 16
      %vm783 = vmand %vm781, %vm782
      %v784 = vsel %vm783, 1, 0
      %v785 = vcvt.s32.f32 %v784
      %v786 = vmul.f32 %v768, %v785
      %788 = vrot.lane.b32.xlu0 %v786, 120
      %v789 = vpop.permute.xlu0 %788
      %v791 = vadd.f32 %v780, %v789
      %vm792 = vcmp.ge.s32.totalorder %v773, 16
      %vm793 = vcmp.lt.s32.totalorder %v773, 24
      %vm794 = vmand %vm792, %vm793
      %v795 = vsel %vm794, 1, 0
      %v796 = vcvt.s32.f32 %v795
      %v797 = vmul.f32 %v768, %v796
      %799 = vrot.lane.b32.xlu0 %v797, 112
      %v800 = vpop.permute.xlu0 %799
      %v802 = vadd.f32 %v791, %v800
      %vm803 = vcmp.ge.s32.totalorder %v773, 24
      %vm804 = vcmp.lt.s32.totalorder %v773, 32
      %vm805 = vmand %vm803, %vm804
      %v806 = vsel %vm805, 1, 0
      %v807 = vcvt.s32.f32 %v806
      %v808 = vmul.f32 %v768, %v807
      %810 = vrot.lane.b32.xlu0 %v808, 104
      %v811 = vpop.permute.xlu0 %810
      %v813 = vadd.f32 %v802, %v811
      %815 = vrot.lane.b32.xlu0 %v813, 8
      %v816 = vpop.permute.xlu0 %815
      %vm818 = vcmask 130112
      %819 = vst.msk [vmem:[#allocation3] sm:$0xff] %vm818, %v816
      %s820 = scalar_lea.vmem %s1, 8
      %v821 = vld [vmem:[%s820] sm:$0xf]
      %v823 = vsel %vm638, %v821, 0
      %825 = vmatprep.subr.bf16.mxu0 0
      %826 = vmatpush1.bf16.msra.mxu0 %v644
      %827 = vmatprep.subr.bf16.mxu0 0
      %828 = vmatpush1.bf16.msra.mxu0 0
      %829 = vmatprep.subr.bf16.mxu0 0
      %830 = vmatpush1.bf16.msra.mxu0 0
      %831 = vmatprep.subr.bf16.mxu0 0
      %832 = vmatpush1.bf16.msra.mxu0 0
      %833 = vmatprep.subr.bf16.mxu0 0
      %834 = vmatpush1.bf16.msra.mxu0 0
      %835 = vmatprep.subr.bf16.mxu0 0
      %836 = vmatpush1.bf16.msra.mxu0 0
      %837 = vmatprep.subr.bf16.mxu0 0
      %838 = vmatpush1.bf16.msra.mxu0 0
      %839 = vmatprep.subr.bf16.mxu0 0
      %840 = vmatpush1.bf16.msra.mxu0 0
      %841 = vmatprep.subr.bf16.mxu0 0
      %842 = vmatpush1.bf16.msra.mxu0 0
      %843 = vmatprep.subr.bf16.mxu0 0
      %844 = vmatpush1.bf16.msra.mxu0 0
      %845 = vmatprep.subr.bf16.mxu0 0
      %846 = vmatpush1.bf16.msra.mxu0 0
      %847 = vmatprep.subr.bf16.mxu0 0
      %848 = vmatpush1.bf16.msra.mxu0 0
      %849 = vmatprep.subr.bf16.mxu0 0
      %850 = vmatpush1.bf16.msra.mxu0 0
      %851 = vmatprep.subr.bf16.mxu0 0
      %852 = vmatpush1.bf16.msra.mxu0 0
      %853 = vmatprep.subr.bf16.mxu0 0
      %854 = vmatpush1.bf16.msra.mxu0 0
      %855 = vmatprep.subr.bf16.mxu0 0
      %856 = vmatpush1.bf16.msra.mxu0 0
      %857 = vmatprep.mubr.bf16.mxu0 0
      %858 = vmatmul.mubr.bf16.gmra.mrb[0].mxu0 %v823
      %v859 = vpop.f32.mrb[0].mxu0
      %v860 = vadd.f32 0.0, %v859
      %v861 = vpop.f32.mrb[0].mxu0
      %v862 = vpop.f32.mrb[0].mxu0
      %v863 = vpop.f32.mrb[0].mxu0
      %864 = vdwg.mxu0
      %v865 = vadd.s32 %v686, 2
      %vm866 = vcmp.ge.s32.totalorder %v865, 0
      %vm867 = vcmp.lt.s32.totalorder %v865, 8
      %vm868 = vmand %vm866, %vm867
      %v869 = vsel %vm868, 1, 0
      %v870 = vcvt.s32.f32 %v869
      %v871 = vmul.f32 %v860, %v870
      %v872 = vadd.f32 %v871, 0.0
      %vm873 = vcmp.ge.s32.totalorder %v865, 8
      %vm874 = vcmp.lt.s32.totalorder %v865, 16
      %vm875 = vmand %vm873, %vm874
      %v876 = vsel %vm875, 1, 0
      %v877 = vcvt.s32.f32 %v876
      %v878 = vmul.f32 %v860, %v877
      %880 = vrot.lane.b32.xlu0 %v878, 120
      %v881 = vpop.permute.xlu0 %880
      %v883 = vadd.f32 %v872, %v881
      %vm884 = vcmp.ge.s32.totalorder %v865, 16
      %vm885 = vcmp.lt.s32.totalorder %v865, 24
      %vm886 = vmand %vm884, %vm885
      %v887 = vsel %vm886, 1, 0
      %v888 = vcvt.s32.f32 %v887
      %v889 = vmul.f32 %v860, %v888
      %891 = vrot.lane.b32.xlu0 %v889, 112
      %v892 = vpop.permute.xlu0 %891
      %v894 = vadd.f32 %v883, %v892
      %vm895 = vcmp.ge.s32.totalorder %v865, 24
      %vm896 = vcmp.lt.s32.totalorder %v865, 32
      %vm897 = vmand %vm895, %vm896
      %v898 = vsel %vm897, 1, 0
      %v899 = vcvt.s32.f32 %v898
      %v900 = vmul.f32 %v860, %v899
      %902 = vrot.lane.b32.xlu0 %v900, 104
      %v903 = vpop.permute.xlu0 %902
      %v905 = vadd.f32 %v894, %v903
      %907 = vrot.lane.b32.xlu0 %v905, 16
      %v908 = vpop.permute.xlu0 %907
      %vm910 = vcmask 195712
      %911 = vst.msk [vmem:[#allocation3] sm:$0xff] %vm910, %v908
      %s912 = scalar_lea.vmem %s1, 12
      %v913 = vld [vmem:[%s912] sm:$0xf]
      %v915 = vsel %vm638, %v913, 0
      %917 = vmatprep.subr.bf16.mxu0 0
      %918 = vmatpush1.bf16.msra.mxu0 %v644
      %919 = vmatprep.subr.bf16.mxu0 0
      %920 = vmatpush1.bf16.msra.mxu0 0
      %921 = vmatprep.subr.bf16.mxu0 0
      %922 = vmatpush1.bf16.msra.mxu0 0
      %923 = vmatprep.subr.bf16.mxu0 0
      %924 = vmatpush1.bf16.msra.mxu0 0
      %925 = vmatprep.subr.bf16.mxu0 0
      %926 = vmatpush1.bf16.msra.mxu0 0
      %927 = vmatprep.subr.bf16.mxu0 0
      %928 = vmatpush1.bf16.msra.mxu0 0
      %929 = vmatprep.subr.bf16.mxu0 0
      %930 = vmatpush1.bf16.msra.mxu0 0
      %931 = vmatprep.subr.bf16.mxu0 0
      %932 = vmatpush1.bf16.msra.mxu0 0
      %933 = vmatprep.subr.bf16.mxu0 0
      %934 = vmatpush1.bf16.msra.mxu0 0
      %935 = vmatprep.subr.bf16.mxu0 0
      %936 = vmatpush1.bf16.msra.mxu0 0
      %937 = vmatprep.subr.bf16.mxu0 0
      %938 = vmatpush1.bf16.msra.mxu0 0
      %939 = vmatprep.subr.bf16.mxu0 0
      %940 = vmatpush1.bf16.msra.mxu0 0
      %941 = vmatprep.subr.bf16.mxu0 0
      %942 = vmatpush1.bf16.msra.mxu0 0
      %943 = vmatprep.subr.bf16.mxu0 0
      %944 = vmatpush1.bf16.msra.mxu0 0
      %945 = vmatprep.subr.bf16.mxu0 0
      %946 = vmatpush1.bf16.msra.mxu0 0
      %947 = vmatprep.subr.bf16.mxu0 0
      %948 = vmatpush1.bf16.msra.mxu0 0
      %949 = vmatprep.mubr.bf16.mxu0 0
      %950 = vmatmul.mubr.bf16.gmra.mrb[0].mxu0 %v915
      %v951 = vpop.f32.mrb[0].mxu0
      %v952 = vadd.f32 0.0, %v951
      %v953 = vpop.f32.mrb[0].mxu0
      %v954 = vpop.f32.mrb[0].mxu0
      %v955 = vpop.f32.mrb[0].mxu0
      %956 = vdwg.mxu0
      %v957 = vadd.s32 %v686, 3
      %vm958 = vcmp.ge.s32.totalorder %v957, 0
      %vm959 = vcmp.lt.s32.totalorder %v957, 8
      %vm960 = vmand %vm958, %vm959
      %v961 = vsel %vm960, 1, 0
      %v962 = vcvt.s32.f32 %v961
      %v963 = vmul.f32 %v952, %v962
      %v964 = vadd.f32 %v963, 0.0
      %vm965 = vcmp.ge.s32.totalorder %v957, 8
      %vm966 = vcmp.lt.s32.totalorder %v957, 16
      %vm967 = vmand %vm965, %vm966
      %v968 = vsel %vm967, 1, 0
      %v969 = vcvt.s32.f32 %v968
      %v970 = vmul.f32 %v952, %v969
      %972 = vrot.lane.b32.xlu0 %v970, 120
      %v973 = vpop.permute.xlu0 %972
      %v975 = vadd.f32 %v964, %v973
      %vm976 = vcmp.ge.s32.totalorder %v957, 16
      %vm977 = vcmp.lt.s32.totalorder %v957, 24
      %vm978 = vmand %vm976, %vm977
      %v979 = vsel %vm978, 1, 0
      %v980 = vcvt.s32.f32 %v979
      %v981 = vmul.f32 %v952, %v980
      %983 = vrot.lane.b32.xlu0 %v981, 112
      %v984 = vpop.permute.xlu0 %983
      %v986 = vadd.f32 %v975, %v984
      %vm987 = vcmp.ge.s32.totalorder %v957, 24
      %vm988 = vcmp.lt.s32.totalorder %v957, 32
      %vm989 = vmand %vm987, %vm988
      %v990 = vsel %vm989, 1, 0
      %v991 = vcvt.s32.f32 %v990
      %v992 = vmul.f32 %v952, %v991
      %994 = vrot.lane.b32.xlu0 %v992, 104
      %v995 = vpop.permute.xlu0 %994
      %v997 = vadd.f32 %v986, %v995
      %999 = vrot.lane.b32.xlu0 %v997, 24
      %v1000 = vpop.permute.xlu0 %999
      %vm1002 = vcmask 261312
      %1003 = vst.msk [vmem:[#allocation3] sm:$0xff] %vm1002, %v1000
      %v1004 = vld [vmem:[#allocation3] sm:$0xff]
      %v1005 = vpack.c.bf16 %v1004, %v1004
      %v1006 = vld [vmem:[%s533] sm:$0xf]
      %v1007 = vld [vmem:[%s533 + $0x4] sm:$0xf]
      %v1008 = vld [vmem:[%s533 + $0x8] sm:$0xf]
      %v1009 = vld [vmem:[%s533 + $0xc] sm:$0xf]
      %v1010 = vld [vmem:[%s536] sm:$0x1]
      %v1012 = vlaneseq
      %v1013 = vshrl.u32 %v1012, 7
      %v1014 = vsub.s32 0, %v1013
      %v1015 = vrot.slane %v1010, %v1014
      %v1021 = vunpack.c.l.b16 %v1006
      %v1022 = vunpack.c.l.b16 %v1007
      %v1023 = vunpack.c.l.b16 %v1008
      %v1024 = vunpack.c.l.b16 %v1009
      %v1025 = vpack.c.b16 %v1022, %v1021
      %v1026 = vpack.c.b16 %v1024, %v1023
      %v1030 = vsel %vm590, %v1005, 0
      %1032 = vmatprep.subr.bf16.mxu0 0
      %1033 = vmatpush1.bf16.msra.mxu0 %v1025
      %1034 = vmatprep.subr.bf16.mxu0 0
      %1035 = vmatpush1.bf16.msra.mxu0 %v1026
      %1036 = vmatprep.subr.bf16.mxu0 0
      %1037 = vmatpush1.bf16.msra.mxu0 0
      %1038 = vmatprep.subr.bf16.mxu0 0
      %1039 = vmatpush1.bf16.msra.mxu0 0
      %1040 = vmatprep.subr.bf16.mxu0 0
      %1041 = vmatpush1.bf16.msra.mxu0 0
      %1042 = vmatprep.subr.bf16.mxu0 0
      %1043 = vmatpush1.bf16.msra.mxu0 0
      %1044 = vmatprep.subr.bf16.mxu0 0
      %1045 = vmatpush1.bf16.msra.mxu0 0
      %1046 = vmatprep.subr.bf16.mxu0 0
      %1047 = vmatpush1.bf16.msra.mxu0 0
      %1048 = vmatprep.subr.bf16.mxu0 0
      %1049 = vmatpush1.bf16.msra.mxu0 0
      %1050 = vmatprep.subr.bf16.mxu0 0
      %1051 = vmatpush1.bf16.msra.mxu0 0
      %1052 = vmatprep.subr.bf16.mxu0 0
      %1053 = vmatpush1.bf16.msra.mxu0 0
      %1054 = vmatprep.subr.bf16.mxu0 0
      %1055 = vmatpush1.bf16.msra.mxu0 0
      %1056 = vmatprep.subr.bf16.mxu0 0
      %1057 = vmatpush1.bf16.msra.mxu0 0
      %1058 = vmatprep.subr.bf16.mxu0 0
      %1059 = vmatpush1.bf16.msra.mxu0 0
      %1060 = vmatprep.subr.bf16.mxu0 0
      %1061 = vmatpush1.bf16.msra.mxu0 0
      %1062 = vmatprep.subr.bf16.mxu0 0
      %1063 = vmatpush1.bf16.msra.mxu0 0
      %1064 = vmatprep.mubr.bf16.mxu0 0
      %1065 = vmatmul.mubr.bf16.gmra.mrb[0].mxu0 %v1030
      %v1066 = vpop.f32.mrb[0].mxu0
      %v1067 = vadd.f32 %v1015, %v1066
      %v1068 = vpop.f32.mrb[0].mxu0
      %v1069 = vpop.f32.mrb[0].mxu0
      %v1070 = vpop.f32.mrb[0].mxu0
      %1071 = vdwg.mxu0
      %v1072 = vadd.f32 %v565, %v1067
      %v1073 = vsel %vm590, %v1072, 0.0
      %1074 = vadd.xlane.f32.xlu0 %v1073
      %v1075 = vpop.xlane.xlu0 %1074
      %v1076 = vrcp.pop 32.0
      %v1077 = vmul.f32 %v1075, %v1076
      %v1078 = vsub.f32 %v1072, %v1077
      %v1079 = vmul.f32 %v1078, %v1078
      %v1080 = vsel %vm590, %v1079, 0.0
      %1081 = vadd.xlane.f32.xlu0 %v1080
      %v1082 = vpop.xlane.xlu0 %1081
      %v1083 = vmul.f32 %v1082, 0.032258064
      %v1084 = vrsqrt.pop %v1083
      %v1085 = vmul.f32 %v1078, %v1084
      %v1086 = vpack.c.bf16 %v1085, %v1085
      %v1087 = vld [vmem:[%s541] sm:$0xf]
      %v1088 = vld [vmem:[%s541 + $0x4] sm:$0xf]
      %v1089 = vld [vmem:[%s541 + $0x8] sm:$0xf]
      %v1090 = vld [vmem:[%s541 + $0xc] sm:$0xf]
      %v1091 = vld [vmem:[%s544] sm:$0x1]
      %v1093 = vlaneseq
      %v1094 = vshrl.u32 %v1093, 7
      %v1095 = vsub.s32 0, %v1094
      %v1096 = vrot.slane %v1091, %v1095
      %v1102 = vunpack.c.l.b16 %v1087
      %v1103 = vunpack.c.l.b16 %v1088
      %v1104 = vunpack.c.l.b16 %v1089
      %v1105 = vunpack.c.l.b16 %v1090
      %v1106 = vpack.c.b16 %v1103, %v1102
      %v1107 = vpack.c.b16 %v1105, %v1104
      %v1111 = vsel %vm590, %v1086, 0
      %1113 = vmatprep.subr.bf16.mxu0 0
      %1114 = vmatpush1.bf16.msra.mxu0 %v1106
      %1115 = vmatprep.subr.bf16.mxu0 0
      %1116 = vmatpush1.bf16.msra.mxu0 %v1107
      %1117 = vmatprep.subr.bf16.mxu0 0
      %1118 = vmatpush1.bf16.msra.mxu0 0
      %1119 = vmatprep.subr.bf16.mxu0 0
      %1120 = vmatpush1.bf16.msra.mxu0 0
      %1121 = vmatprep.subr.bf16.mxu0 0
      %1122 = vmatpush1.bf16.msra.mxu0 0
      %1123 = vmatprep.subr.bf16.mxu0 0
      %1124 = vmatpush1.bf16.msra.mxu0 0
      %1125 = vmatprep.subr.bf16.mxu0 0
      %1126 = vmatpush1.bf16.msra.mxu0 0
      %1127 = vmatprep.subr.bf16.mxu0 0
      %1128 = vmatpush1.bf16.msra.mxu0 0
      %1129 = vmatprep.subr.bf16.mxu0 0
      %1130 = vmatpush1.bf16.msra.mxu0 0
      %1131 = vmatprep.subr.bf16.mxu0 0
      %1132 = vmatpush1.bf16.msra.mxu0 0
      %1133 = vmatprep.subr.bf16.mxu0 0
      %1134 = vmatpush1.bf16.msra.mxu0 0
      %1135 = vmatprep.subr.bf16.mxu0 0
      %1136 = vmatpush1.bf16.msra.mxu0 0
      %1137 = vmatprep.subr.bf16.mxu0 0
      %1138 = vmatpush1.bf16.msra.mxu0 0
      %1139 = vmatprep.subr.bf16.mxu0 0
      %1140 = vmatpush1.bf16.msra.mxu0 0
      %1141 = vmatprep.subr.bf16.mxu0 0
      %1142 = vmatpush1.bf16.msra.mxu0 0
      %1143 = vmatprep.subr.bf16.mxu0 0
      %1144 = vmatpush1.bf16.msra.mxu0 0
      %1145 = vmatprep.mubr.bf16.mxu0 0
      %1146 = vmatmul.mubr.bf16.gmra.mrb[0].mxu0 %v1111
      %v1147 = vpop.f32.mrb[0].mxu0
      %v1148 = vadd.f32 %v1096, %v1147
      %v1149 = vpop.f32.mrb[0].mxu0
      %v1150 = vpop.f32.mrb[0].mxu0
      %v1151 = vpop.f32.mrb[0].mxu0
      %1152 = vdwg.mxu0
      %v1153 = vmax.f32 %v1148, 0.0
      %v1154 = vpack.c.bf16 %v1153, %v1153
      %v1155 = vld [vmem:[%s549] sm:$0xf]
      %v1156 = vld [vmem:[%s549 + $0x4] sm:$0xf]
      %v1157 = vld [vmem:[%s549 + $0x8] sm:$0xf]
      %v1158 = vld [vmem:[%s549 + $0xc] sm:$0xf]
      %v1159 = vld [vmem:[%s549 + $0x10] sm:$0xf]
      %v1160 = vld [vmem:[%s549 + $0x14] sm:$0xf]
      %v1161 = vld [vmem:[%s549 + $0x18] sm:$0xf]
      %v1162 = vld [vmem:[%s549 + $0x1c] sm:$0xf]
      %v1163 = vld [vmem:[%s552] sm:$0x1]
      %v1165 = vlaneseq
      %v1166 = vshrl.u32 %v1165, 7
      %v1167 = vsub.s32 0, %v1166
      %v1168 = vrot.slane %v1163, %v1167
      %v1178 = vunpack.c.l.b16 %v1155
      %v1179 = vunpack.c.l.b16 %v1156
      %v1180 = vunpack.c.l.b16 %v1157
      %v1181 = vunpack.c.l.b16 %v1158
      %v1182 = vunpack.c.l.b16 %v1159
      %v1183 = vunpack.c.l.b16 %v1160
      %v1184 = vunpack.c.l.b16 %v1161
      %v1185 = vunpack.c.l.b16 %v1162
      %v1186 = vpack.c.b16 %v1179, %v1178
      %v1187 = vpack.c.b16 %v1181, %v1180
      %v1188 = vpack.c.b16 %v1183, %v1182
      %v1189 = vpack.c.b16 %v1185, %v1184
      %vm1194 = vcmask 523264
      %v1196 = vsel %vm1194, %v1154, 0
      %1198 = vmatprep.subr.bf16.mxu0 0
      %1199 = vmatpush1.bf16.msra.mxu0 %v1186
      %1200 = vmatprep.subr.bf16.mxu0 0
      %1201 = vmatpush1.bf16.msra.mxu0 %v1187
      %1202 = vmatprep.subr.bf16.mxu0 0
      %1203 = vmatpush1.bf16.msra.mxu0 %v1188
      %1204 = vmatprep.subr.bf16.mxu0 0
      %1205 = vmatpush1.bf16.msra.mxu0 %v1189
      %1206 = vmatprep.subr.bf16.mxu0 0
      %1207 = vmatpush1.bf16.msra.mxu0 0
      %1208 = vmatprep.subr.bf16.mxu0 0
      %1209 = vmatpush1.bf16.msra.mxu0 0
      %1210 = vmatprep.subr.bf16.mxu0 0
      %1211 = vmatpush1.bf16.msra.mxu0 0
      %1212 = vmatprep.subr.bf16.mxu0 0
      %1213 = vmatpush1.bf16.msra.mxu0 0
      %1214 = vmatprep.subr.bf16.mxu0 0
      %1215 = vmatpush1.bf16.msra.mxu0 0
      %1216 = vmatprep.subr.bf16.mxu0 0
      %1217 = vmatpush1.bf16.msra.mxu0 0
      %1218 = vmatprep.subr.bf16.mxu0 0
      %1219 = vmatpush1.bf16.msra.mxu0 0
      %1220 = vmatprep.subr.bf16.mxu0 0
      %1221 = vmatpush1.bf16.msra.mxu0 0
      %1222 = vmatprep.subr.bf16.mxu0 0
      %1223 = vmatpush1.bf16.msra.mxu0 0
      %1224 = vmatprep.subr.bf16.mxu0 0
      %1225 = vmatpush1.bf16.msra.mxu0 0
      %1226 = vmatprep.subr.bf16.mxu0 0
      %1227 = vmatpush1.bf16.msra.mxu0 0
      %1228 = vmatprep.subr.bf16.mxu0 0
      %1229 = vmatpush1.bf16.msra.mxu0 0
      %1230 = vmatprep.mubr.bf16.mxu0 0
      %1231 = vmatmul.mubr.bf16.gmra.mrb[0].mxu0 %v1196
      %v1232 = vpop.f32.mrb[0].mxu0
      %v1233 = vadd.f32 %v1168, %v1232
      %v1234 = vpop.f32.mrb[0].mxu0
      %v1235 = vpop.f32.mrb[0].mxu0
      %v1236 = vpop.f32.mrb[0].mxu0
      %1237 = vdwg.mxu0
      %v1238 = vadd.f32 %v1085, %v1233
      %v1239 = vsel %vm590, %v1238, 0.0
      %1240 = vadd.xlane.f32.xlu0 %v1239
      %v1241 = vpop.xlane.xlu0 %1240
      %v1242 = vmul.f32 %v1241, %v1076
      %v1243 = vsub.f32 %v1238, %v1242
      %v1244 = vmul.f32 %v1243, %v1243
      %v1245 = vsel %vm590, %v1244, 0.0
      %1246 = vadd.xlane.f32.xlu0 %v1245
      %v1247 = vpop.xlane.xlu0 %1246
      %v1248 = vmul.f32 %v1247, 0.032258064
      %v1249 = vrsqrt.pop %v1248
      %v1250 = vmul.f32 %v1243, %v1249
      %1251 = vst.msk [vmem:[#allocation2] sm:$0xff] %vm590, %v1250
      %p1252 = scmp.eq.s32.totalorder %s28, 2
      // Predicated region
      $region73: #{_lambda_.1} parent=67 // pred_check
        %p1253 = pneg %p1252
      $region74: #{_lambda_.1} parent=67 // pred_check_branch
        %1255 = sbr.rel (%p1253) target = $region76
      $region75: #{_lambda_.1} parent=67 // pred_region
        %v1256 = vpack.c.bf16 %v1250, %v1250
        %v1257 = vld [vmem:[%s10] sm:$0xf]
        %v1258 = vld [vmem:[%s10 + $0x4] sm:$0xf]
        %v1259 = vld [vmem:[%s10 + $0x8] sm:$0xf]
        %v1260 = vld [vmem:[%s10 + $0xc] sm:$0xf]
        %v1261 = vld [vmem:[%s11] sm:$0x1]
        %v1263 = vlaneseq
        %v1264 = vshrl.u32 %v1263, 7
        %v1265 = vsub.s32 0, %v1264
        %v1266 = vrot.slane %v1261, %v1265
        %v1272 = vunpack.c.l.b16 %v1257
        %v1273 = vunpack.c.l.b16 %v1258
        %v1274 = vunpack.c.l.b16 %v1259
        %v1275 = vunpack.c.l.b16 %v1260
        %v1276 = vpack.c.b16 %v1273, %v1272
        %v1277 = vpack.c.b16 %v1275, %v1274
        %v1281 = vsel %vm590, %v1256, 0
        %1283 = vmatprep.subr.bf16.mxu0 0
        %1284 = vmatpush1.bf16.msra.mxu0 %v1276
        %1285 = vmatprep.subr.bf16.mxu0 0
        %1286 = vmatpush1.bf16.msra.mxu0 %v1277
        %1287 = vmatprep.subr.bf16.mxu0 0
        %1288 = vmatpush1.bf16.msra.mxu0 0
        %1289 = vmatprep.subr.bf16.mxu0 0
        %1290 = vmatpush1.bf16.msra.mxu0 0
        %1291 = vmatprep.subr.bf16.mxu0 0
        %1292 = vmatpush1.bf16.msra.mxu0 0
        %1293 = vmatprep.subr.bf16.mxu0 0
        %1294 = vmatpush1.bf16.msra.mxu0 0
        %1295 = vmatprep.subr.bf16.mxu0 0
        %1296 = vmatpush1.bf16.msra.mxu0 0
        %1297 = vmatprep.subr.bf16.mxu0 0
        %1298 = vmatpush1.bf16.msra.mxu0 0
        %1299 = vmatprep.subr.bf16.mxu0 0
        %1300 = vmatpush1.bf16.msra.mxu0 0
        %1301 = vmatprep.subr.bf16.mxu0 0
        %1302 = vmatpush1.bf16.msra.mxu0 0
        %1303 = vmatprep.subr.bf16.mxu0 0
        %1304 = vmatpush1.bf16.msra.mxu0 0
        %1305 = vmatprep.subr.bf16.mxu0 0
        %1306 = vmatpush1.bf16.msra.mxu0 0
        %1307 = vmatprep.subr.bf16.mxu0 0
        %1308 = vmatpush1.bf16.msra.mxu0 0
        %1309 = vmatprep.subr.bf16.mxu0 0
        %1310 = vmatpush1.bf16.msra.mxu0 0
        %1311 = vmatprep.subr.bf16.mxu0 0
        %1312 = vmatpush1.bf16.msra.mxu0 0
        %1313 = vmatprep.subr.bf16.mxu0 0
        %1314 = vmatpush1.bf16.msra.mxu0 0
        %1315 = vmatprep.mubr.bf16.mxu0 0
        %1316 = vmatmul.mubr.bf16.gmra.mrb[0].mxu0 %v1281
        %v1317 = vpop.f32.mrb[0].mxu0
        %v1318 = vadd.f32 %v1266, %v1317
        %v1319 = vpop.f32.mrb[0].mxu0
        %v1320 = vpop.f32.mrb[0].mxu0
        %v1321 = vpop.f32.mrb[0].mxu0
        %1322 = vdwg.mxu0
        %1323 = vmax.xlane.f32.xlu0 %v1318
        %v1324 = vpop.xlane.xlu0 %1323
        %v1325 = vsub.f32 %v1318, %v1324
        %v1326 = vmul.f32 %v1325, 1.442695
        %v1327 = vpow.pop %v1326
        %1328 = vadd.xlane.f32.xlu0 %v1327
        %v1329 = vpop.xlane.xlu0 %1328
        %v1330 = vrcp.pop %v1329
        %v1331 = vmul.f32 %v1327, %v1330
        %1332 = vst [vmem:[%s556] sm:$0xff] %v1331
      $region76: #{_lambda_.1} parent=67 // pred_fallthru
        _
      %p1333 = scmp.lt.s32.totalorder %s27, 1
      %s1334 = scalar_select %p1333, %s27, 1
      %s1335 = smul.addr %s1334, 8
      %s1336 = scalar_lea.vmem %s12, %s1335
      // Predicated region
      $region77: #{_lambda_.1} parent=67 // pred_check
        %p1337 = pneg %p350
      $region78: #{_lambda_.1} parent=67 // pred_check_branch
        %1339 = sbr.rel (%p1337) target = $region80
      $region79: #{_lambda_.1} parent=67 // pred_region
        _
      $region80: #{_lambda_.1} parent=67 // pred_fallthru
        _
    $region68: #{_lambda_.1} parent=5 // pred_fallthru
      _
    %p1340 = scmp.le.s32.totalorder 2, %s18
    // Predicated region
    $region81: #{_lambda_.1} parent=5 // pred_check
      %p1341 = pneg %p1340
    $region82: #{_lambda_.1} parent=5 // pred_check_branch
      %1343 = sbr.rel (%p1341) target = $region84
    $region83: #{_lambda_.1} parent=5 // pred_region
      %s1344 = ssub.s32 %s18, 2
      // Predicated region
      $region85: #{_lambda_.1} parent=83 // pred_check
        %p1345 = pneg %p356
      $region86: #{_lambda_.1} parent=83 // pred_check_branch
        %1347 = sbr.rel (%p1345) target = $region88
      $region87: #{_lambda_.1} parent=83 // pred_region
        %p1348 = scmp.lt.s32.totalorder %s29, 1
        %s1349 = scalar_select %p1348, %s29, 1
        %s1350 = smul.addr %s1349, 8
        %s1351 = scalar_lea.vmem %s12, %s1350
      $region88: #{_lambda_.1} parent=83 // pred_fallthru
        _
    $region84: #{_lambda_.1} parent=5 // pred_fallthru
      _
  $region6: #{_lambda_.1} parent=0 // loop_footer
    %s22 = sadd.s32 1, %s18
  $region7: #{_lambda_.1} parent=0 // loop_footer_branch
    %17 = sbr.rel target = $region3
  $region8: #{_lambda_.1} parent=0 // loop_exit
    _

</llo_original>
